<compile_context>
chip_gen: v5e
topology: v5e:2x2
jax: 0.10.0
libtpu: 0.0.40
codegen_flags: <defaults>
</compile_context>

<pallas_src>
import functools

import jax
import jax.numpy as jnp
from jax.experimental import pallas as pl
from jax.experimental.pallas import tpu as pltpu


def _round_up(v, m):
    return ((v + m - 1) // m) * m


# ----------------------------------------------------------------------------
# Pallas kernel: the WHOLE BNN forward for one Monte-Carlo sample, fused.
#   refs = (x_ref, p0_ref, e0_ref, p1_ref, e1_ref, ..., o_ref)
#   p{i}: [d_in+1, 2*d_out] f32  -- rows [0:d_in] = (w_mu | w_sigma),
#                                   row   d_in    = (b_mu | b_sigma)
#   e{i}: [1, d_in+1, d_out] bf16 -- this sample's eps (last row = bias eps)
# ----------------------------------------------------------------------------
def _fused_bnn_kernel(*refs, layer_dims, use_bf16_matmul):
    x_ref = refs[0]
    o_ref = refs[-1]
    layer_refs = refs[1:-1]
    n_layers = len(layer_dims)
    assert len(layer_refs) == 2 * n_layers

    h = x_ref[...]  # [B, d_in0] f32 -- stays on-chip across all layers
    for li, (d_in, d_out) in enumerate(layer_dims):
        p_ref = layer_refs[2 * li]
        e_ref = layer_refs[2 * li + 1]

        w_mu = p_ref[:d_in, :d_out]
        w_sig = p_ref[:d_in, d_out:]
        b_mu = p_ref[d_in:, :d_out]
        b_sig = p_ref[d_in:, d_out:]
        w_eps = e_ref[0, :d_in, :].astype(jnp.float32)
        b_eps = e_ref[0, d_in:, :].astype(jnp.float32)

        # Reparameterised sample (sigma precomputed host-side -> VPU-only here).
        w = w_mu + w_sig * w_eps
        b = b_mu + b_sig * b_eps

        if use_bf16_matmul:
            # bf16 MXU inputs, f32 accumulate (MXU-native on v5e/v6e/v7x).
            y = jnp.dot(h.astype(jnp.bfloat16), w.astype(jnp.bfloat16),
                        preferred_element_type=jnp.float32)
        else:
            y = jnp.dot(h, w, preferred_element_type=jnp.float32)
        h = y + b
        if li < n_layers - 1:
            h = jnp.maximum(h, 0.0)  # ReLU on all but the last layer

    o_ref[0] = h.astype(o_ref.dtype)


# ----------------------------------------------------------------------------
# Host-side packing: flatten x, precompute sigma = softplus(rho), pad every
# layer to a lane-dense (multiple-of-128) output width, pack (mu|sigma) + bias
# into one slab per layer, and draw per-sample eps (bf16).
# ----------------------------------------------------------------------------
def _build_inputs(params, x, key, n_samples, eps_dtype=jnp.bfloat16):
    x = x.reshape(x.shape[0], -1).astype(jnp.float32)
    B, n_in = x.shape
    n_out = params[-1]["w_mu"].shape[1]

    d_in_p = _round_up(n_in, 128)
    if d_in_p != n_in:
        x = jnp.pad(x, ((0, 0), (0, d_in_p - n_in)))

    slabs, eps_slabs, dims = [], [], []
    keys = jax.random.split(key, len(params))
    for p, k in zip(params, keys):
        w_mu = jnp.asarray(p["w_mu"], jnp.float32)
        w_sig = jax.nn.softplus(jnp.asarray(p["w_rho"], jnp.float32))
        b_mu = jnp.asarray(p["b_mu"], jnp.float32).reshape(1, -1)
        b_sig = jax.nn.softplus(jnp.asarray(p["b_rho"], jnp.float32)).reshape(1, -1)

        d_in, d_out = w_mu.shape
        assert d_in <= d_in_p, (d_in, d_in_p)
        d_out_p = _round_up(d_out, 128)

        def pad(a, rows, cols):
            return jnp.pad(a, ((0, rows - a.shape[0]), (0, cols - a.shape[1])))

        # Zero-padded rows/cols: mu = sigma = bias = 0 -> contribute exactly 0.
        w_mu, w_sig = pad(w_mu, d_in_p, d_out_p), pad(w_sig, d_in_p, d_out_p)
        b_mu, b_sig = pad(b_mu, 1, d_out_p), pad(b_sig, 1, d_out_p)

        slab = jnp.concatenate(
            [jnp.concatenate([w_mu, w_sig], axis=1),
             jnp.concatenate([b_mu, b_sig], axis=1)], axis=0)  # [d_in_p+1, 2*d_out_p]
        eps = jax.random.normal(
            k, (n_samples, d_in_p + 1, d_out_p), jnp.float32).astype(eps_dtype)

        slabs.append(slab)
        eps_slabs.append(eps)
        dims.append((d_in_p, d_out_p))
        d_in_p = d_out_p  # next layer consumes this layer's padded width
    return x, slabs, eps_slabs, tuple(dims), B, n_out


# ----------------------------------------------------------------------------
# Wrapper: one pallas_call, grid over Monte-Carlo samples.
# ----------------------------------------------------------------------------
def vectorized_bnn_forward(params, x, key, n_samples=1, *, use_bf16_matmul=True):
    """Returns [n_samples, B, n_out]; each sample uses an independent weight draw."""
    x_p, slabs, eps_slabs, dims, B, n_out = _build_inputs(params, x, key, n_samples)
    n_in_p = x_p.shape[1]
    n_out_p = dims[-1][1]

    # mu/sigma slabs return the same block for every sample -> resident in VMEM;
    # only the per-sample eps block changes along the grid.
    in_specs = [pl.BlockSpec((B, n_in_p), lambda s: (0, 0))]
    args = [x_p]
    for slab, eps, (d_in_p, d_out_p) in zip(slabs, eps_slabs, dims):
        in_specs.append(pl.BlockSpec(slab.shape, lambda s: (0, 0)))
        in_specs.append(pl.BlockSpec((1, d_in_p + 1, d_out_p), lambda s: (s, 0, 0)))
        args.append(slab)
        args.append(eps)

    kernel = functools.partial(_fused_bnn_kernel, layer_dims=dims,
                               use_bf16_matmul=use_bf16_matmul)

    out = pl.pallas_call(
        kernel,
        out_shape=jax.ShapeDtypeStruct((n_samples, B, n_out_p), jnp.float32),
        grid=(n_samples,),
        in_specs=in_specs,
        out_specs=pl.BlockSpec((1, B, n_out_p), lambda s: (s, 0, 0)),
        compiler_params=pltpu.CompilerParams(
            # Sample axis is independent -> shard across both TCs on v7x.
            dimension_semantics=("parallel",),
        ),
    )(*args)
    return out[:, :, :n_out]


# ----------------------------------------------------------------------------
# Pure-JAX reference (same packed inputs / eps) for correctness checking.
# ----------------------------------------------------------------------------
def _reference_forward(params, x, key, n_samples, *, use_bf16_matmul=True):
    x_p, slabs, eps_slabs, dims, B, n_out = _build_inputs(params, x, key, n_samples)
    outs = []
    for s in range(n_samples):
        h = x_p
        for li, (slab, eps, (d_in, d_out)) in enumerate(zip(slabs, eps_slabs, dims)):
            w = slab[:d_in, :d_out] + slab[:d_in, d_out:] * eps[s, :d_in, :].astype(jnp.float32)
            b = slab[d_in:, :d_out] + slab[d_in:, d_out:] * eps[s, d_in:, :].astype(jnp.float32)
            if use_bf16_matmul:
                y = jnp.dot(h.astype(jnp.bfloat16), w.astype(jnp.bfloat16),
                            preferred_element_type=jnp.float32)
            else:
                y = jnp.dot(h, w, preferred_element_type=jnp.float32)
            h = y + b
            if li < len(dims) - 1:
                h = jnp.maximum(h, 0.0)
        outs.append(h)
    return jnp.stack(outs)[:, :, :n_out]


# ----------------------------------------------------------------------------
# Parameter construction (matches BayesianLinearLayer shapes, stored [in, out])
# ----------------------------------------------------------------------------
def init_vectorized_bnn_params(key, n_input, n_output, n_hidden=128,
                               n_hidden_layers=2):
    dims = [(n_input, n_hidden)]
    dims += [(n_hidden, n_hidden)] * n_hidden_layers
    dims += [(n_hidden, n_output)]
    params = []
    for (d_in, d_out) in dims:
        key, k_wmu, k_bmu = jax.random.split(key, 3)
        w_mu = jax.random.uniform(k_wmu, (d_in, d_out), jnp.float32, -0.2, 0.2)
        w_rho = jnp.full((d_in, d_out), -5.0, jnp.float32)
        b_mu = jax.random.uniform(k_bmu, (1, d_out), jnp.float32, -0.2, 0.2)
        b_rho = jnp.full((1, d_out), -5.0, jnp.float32)
        params.append({"w_mu": w_mu, "w_rho": w_rho,
                       "b_mu": b_mu, "b_rho": b_rho})
    return params


if __name__ == "__main__":
    key = jax.random.PRNGKey(0)
    k_param, k_x, k_eps = jax.random.split(key, 3)

    # Small demo shapes: batch=8, input 4x16x16 -> flattened n_input=1024,
    # n_hidden=128 (lane-dense), n_hidden_layers=2, n_output=8, 4 MC samples.
    batch, n_hidden, n_output, n_samples = 8, 128, 8, 4
    x = jax.random.normal(k_x, (batch, 4, 16, 16), jnp.float32)
    n_input = 4 * 16 * 16

    params = init_vectorized_bnn_params(k_param, n_input, n_output,
                                        n_hidden=n_hidden, n_hidden_layers=2)

    y = vectorized_bnn_forward(params, x, k_eps, n_samples=n_samples)
    y = jax.block_until_ready(y)
    assert y.shape == (n_samples, batch, n_output), y.shape
    assert bool(jnp.all(jnp.isfinite(y)))

    y_ref = _reference_forward(params, x, k_eps, n_samples)
    max_err = float(jnp.max(jnp.abs(y - y_ref)))
    assert max_err < 5e-2, f"max abs err vs reference: {max_err}"

    print("KERNEL_OK")
</pallas_src>

<mosaic_0001>
module attributes {stable_mosaic.version = 11 : i64} {
  func.func @_fused_bnn_kernel(%arg0: i32, %arg1: memref<8x1024xf32, #tpu.memory_space<vmem>>, %arg2: memref<1025x256xf32, #tpu.memory_space<vmem>>, %arg3: memref<1x1025x128xbf16, #tpu.memory_space<vmem>>, %arg4: memref<129x256xf32, #tpu.memory_space<vmem>>, %arg5: memref<1x129x128xbf16, #tpu.memory_space<vmem>>, %arg6: memref<129x256xf32, #tpu.memory_space<vmem>>, %arg7: memref<1x129x128xbf16, #tpu.memory_space<vmem>>, %arg8: memref<129x256xf32, #tpu.memory_space<vmem>>, %arg9: memref<1x129x128xbf16, #tpu.memory_space<vmem>>, %arg10: memref<1x8x128xf32, #tpu.memory_space<vmem>>) attributes {dimension_semantics = [#tpu.dimension_semantics<parallel>], iteration_bounds = array<i64: 4>, scalar_prefetch = 0 : i64, scratch_operands = 0 : i64, tpu.core_type = #tpu.core_type<tc>, window_params = [{pipeline_mode = #tpu.pipeline_mode<synchronous>, transform_indices = @transform_0, window_bounds = array<i64: 8, 1024>}, {pipeline_mode = #tpu.pipeline_mode<synchronous>, transform_indices = @transform_1, window_bounds = array<i64: 1025, 256>}, {transform_indices = @transform_2, window_bounds = array<i64: 1, 1025, 128>}, {pipeline_mode = #tpu.pipeline_mode<synchronous>, transform_indices = @transform_3, window_bounds = array<i64: 129, 256>}, {transform_indices = @transform_4, window_bounds = array<i64: 1, 129, 128>}, {pipeline_mode = #tpu.pipeline_mode<synchronous>, transform_indices = @transform_5, window_bounds = array<i64: 129, 256>}, {transform_indices = @transform_6, window_bounds = array<i64: 1, 129, 128>}, {pipeline_mode = #tpu.pipeline_mode<synchronous>, transform_indices = @transform_7, window_bounds = array<i64: 129, 256>}, {transform_indices = @transform_8, window_bounds = array<i64: 1, 129, 128>}, {transform_indices = @transform_9, window_bounds = array<i64: 1, 8, 128>}]} {
    %c0 = arith.constant 0 : index
    %c0_0 = arith.constant 0 : index
    %0 = vector.load %arg1[%c0, %c0_0] : memref<8x1024xf32, #tpu.memory_space<vmem>>, vector<8x1024xf32>
    %c0_1 = arith.constant 0 : index
    %c0_2 = arith.constant 0 : index
    %1 = vector.load %arg2[%c0_1, %c0_2] : memref<1025x256xf32, #tpu.memory_space<vmem>>, vector<1024x128xf32>
    %c0_3 = arith.constant 0 : index
    %c128 = arith.constant 128 : index
    %2 = vector.load %arg2[%c0_3, %c128] : memref<1025x256xf32, #tpu.memory_space<vmem>>, vector<1024x128xf32>
    %c1024 = arith.constant 1024 : index
    %c0_4 = arith.constant 0 : index
    %3 = vector.load %arg2[%c1024, %c0_4] : memref<1025x256xf32, #tpu.memory_space<vmem>>, vector<1x128xf32>
    %c1024_5 = arith.constant 1024 : index
    %c128_6 = arith.constant 128 : index
    %4 = vector.load %arg2[%c1024_5, %c128_6] : memref<1025x256xf32, #tpu.memory_space<vmem>>, vector<1x128xf32>
    %c0_7 = arith.constant 0 : index
    %c0_8 = arith.constant 0 : index
    %c0_9 = arith.constant 0 : index
    %5 = vector.load %arg3[%c0_7, %c0_8, %c0_9] : memref<1x1025x128xbf16, #tpu.memory_space<vmem>>, vector<1x1024x128xbf16>
    %6 = vector.shape_cast %5 : vector<1x1024x128xbf16> to vector<1024x128xbf16>
    %7 = arith.extf %6 : vector<1024x128xbf16> to vector<1024x128xf32>
    %c0_10 = arith.constant 0 : index
    %c1024_11 = arith.constant 1024 : index
    %c0_12 = arith.constant 0 : index
    %8 = vector.load %arg3[%c0_10, %c1024_11, %c0_12] : memref<1x1025x128xbf16, #tpu.memory_space<vmem>>, vector<1x1x128xbf16>
    %9 = vector.shape_cast %8 : vector<1x1x128xbf16> to vector<1x128xbf16>
    %10 = arith.extf %9 : vector<1x128xbf16> to vector<1x128xf32>
    %11 = arith.mulf %2, %7 : vector<1024x128xf32>
    %12 = arith.addf %1, %11 : vector<1024x128xf32>
    %13 = arith.mulf %4, %10 : vector<1x128xf32>
    %14 = arith.addf %3, %13 : vector<1x128xf32>
    %15 = arith.truncf %0 : vector<8x1024xf32> to vector<8x1024xbf16>
    %16 = arith.truncf %12 : vector<1024x128xf32> to vector<1024x128xbf16>
    %cst = arith.constant dense<0.000000e+00> : vector<8x128xf32>
    %17 = tpu.matmul %15, %16, %cst {dimension_numbers = #tpu.dot_dimension_numbers<[1], [0], [0], [1], [0, 0, 1, 1], [], []>} : vector<8x1024xbf16>, vector<1024x128xbf16>, vector<8x128xf32> -> vector<8x128xf32>
    %18 = vector.broadcast %14 : vector<1x128xf32> to vector<8x128xf32>
    %19 = arith.addf %17, %18 : vector<8x128xf32>
    %cst_13 = arith.constant 0.000000e+00 : f32
    %20 = vector.broadcast %cst_13 : f32 to vector<8x128xf32>
    %21 = arith.maximumf %19, %20 : vector<8x128xf32>
    %c0_14 = arith.constant 0 : index
    %c0_15 = arith.constant 0 : index
    %22 = vector.load %arg4[%c0_14, %c0_15] : memref<129x256xf32, #tpu.memory_space<vmem>>, vector<128x128xf32>
    %c0_16 = arith.constant 0 : index
    %c128_17 = arith.constant 128 : index
    %23 = vector.load %arg4[%c0_16, %c128_17] : memref<129x256xf32, #tpu.memory_space<vmem>>, vector<128x128xf32>
    %c128_18 = arith.constant 128 : index
    %c0_19 = arith.constant 0 : index
    %24 = vector.load %arg4[%c128_18, %c0_19] : memref<129x256xf32, #tpu.memory_space<vmem>>, vector<1x128xf32>
    %c128_20 = arith.constant 128 : index
    %c128_21 = arith.constant 128 : index
    %25 = vector.load %arg4[%c128_20, %c128_21] : memref<129x256xf32, #tpu.memory_space<vmem>>, vector<1x128xf32>
    %c0_22 = arith.constant 0 : index
    %c0_23 = arith.constant 0 : index
    %c0_24 = arith.constant 0 : index
    %26 = vector.load %arg5[%c0_22, %c0_23, %c0_24] : memref<1x129x128xbf16, #tpu.memory_space<vmem>>, vector<1x128x128xbf16>
    %27 = vector.shape_cast %26 : vector<1x128x128xbf16> to vector<128x128xbf16>
    %28 = arith.extf %27 : vector<128x128xbf16> to vector<128x128xf32>
    %c0_25 = arith.constant 0 : index
    %c128_26 = arith.constant 128 : index
    %c0_27 = arith.constant 0 : index
    %29 = vector.load %arg5[%c0_25, %c128_26, %c0_27] : memref<1x129x128xbf16, #tpu.memory_space<vmem>>, vector<1x1x128xbf16>
    %30 = vector.shape_cast %29 : vector<1x1x128xbf16> to vector<1x128xbf16>
    %31 = arith.extf %30 : vector<1x128xbf16> to vector<1x128xf32>
    %32 = arith.mulf %23, %28 : vector<128x128xf32>
    %33 = arith.addf %22, %32 : vector<128x128xf32>
    %34 = arith.mulf %25, %31 : vector<1x128xf32>
    %35 = arith.addf %24, %34 : vector<1x128xf32>
    %36 = arith.truncf %21 : vector<8x128xf32> to vector<8x128xbf16>
    %37 = arith.truncf %33 : vector<128x128xf32> to vector<128x128xbf16>
    %cst_28 = arith.constant dense<0.000000e+00> : vector<8x128xf32>
    %38 = tpu.matmul %36, %37, %cst_28 {dimension_numbers = #tpu.dot_dimension_numbers<[1], [0], [0], [1], [0, 0, 1, 1], [], []>} : vector<8x128xbf16>, vector<128x128xbf16>, vector<8x128xf32> -> vector<8x128xf32>
    %39 = vector.broadcast %35 : vector<1x128xf32> to vector<8x128xf32>
    %40 = arith.addf %38, %39 : vector<8x128xf32>
    %cst_29 = arith.constant 0.000000e+00 : f32
    %41 = vector.broadcast %cst_29 : f32 to vector<8x128xf32>
    %42 = arith.maximumf %40, %41 : vector<8x128xf32>
    %c0_30 = arith.constant 0 : index
    %c0_31 = arith.constant 0 : index
    %43 = vector.load %arg6[%c0_30, %c0_31] : memref<129x256xf32, #tpu.memory_space<vmem>>, vector<128x128xf32>
    %c0_32 = arith.constant 0 : index
    %c128_33 = arith.constant 128 : index
    %44 = vector.load %arg6[%c0_32, %c128_33] : memref<129x256xf32, #tpu.memory_space<vmem>>, vector<128x128xf32>
    %c128_34 = arith.constant 128 : index
    %c0_35 = arith.constant 0 : index
    %45 = vector.load %arg6[%c128_34, %c0_35] : memref<129x256xf32, #tpu.memory_space<vmem>>, vector<1x128xf32>
    %c128_36 = arith.constant 128 : index
    %c128_37 = arith.constant 128 : index
    %46 = vector.load %arg6[%c128_36, %c128_37] : memref<129x256xf32, #tpu.memory_space<vmem>>, vector<1x128xf32>
    %c0_38 = arith.constant 0 : index
    %c0_39 = arith.constant 0 : index
    %c0_40 = arith.constant 0 : index
    %47 = vector.load %arg7[%c0_38, %c0_39, %c0_40] : memref<1x129x128xbf16, #tpu.memory_space<vmem>>, vector<1x128x128xbf16>
    %48 = vector.shape_cast %47 : vector<1x128x128xbf16> to vector<128x128xbf16>
    %49 = arith.extf %48 : vector<128x128xbf16> to vector<128x128xf32>
    %c0_41 = arith.constant 0 : index
    %c128_42 = arith.constant 128 : index
    %c0_43 = arith.constant 0 : index
    %50 = vector.load %arg7[%c0_41, %c128_42, %c0_43] : memref<1x129x128xbf16, #tpu.memory_space<vmem>>, vector<1x1x128xbf16>
    %51 = vector.shape_cast %50 : vector<1x1x128xbf16> to vector<1x128xbf16>
    %52 = arith.extf %51 : vector<1x128xbf16> to vector<1x128xf32>
    %53 = arith.mulf %44, %49 : vector<128x128xf32>
    %54 = arith.addf %43, %53 : vector<128x128xf32>
    %55 = arith.mulf %46, %52 : vector<1x128xf32>
    %56 = arith.addf %45, %55 : vector<1x128xf32>
    %57 = arith.truncf %42 : vector<8x128xf32> to vector<8x128xbf16>
    %58 = arith.truncf %54 : vector<128x128xf32> to vector<128x128xbf16>
    %cst_44 = arith.constant dense<0.000000e+00> : vector<8x128xf32>
    %59 = tpu.matmul %57, %58, %cst_44 {dimension_numbers = #tpu.dot_dimension_numbers<[1], [0], [0], [1], [0, 0, 1, 1], [], []>} : vector<8x128xbf16>, vector<128x128xbf16>, vector<8x128xf32> -> vector<8x128xf32>
    %60 = vector.broadcast %56 : vector<1x128xf32> to vector<8x128xf32>
    %61 = arith.addf %59, %60 : vector<8x128xf32>
    %cst_45 = arith.constant 0.000000e+00 : f32
    %62 = vector.broadcast %cst_45 : f32 to vector<8x128xf32>
    %63 = arith.maximumf %61, %62 : vector<8x128xf32>
    %c0_46 = arith.constant 0 : index
    %c0_47 = arith.constant 0 : index
    %64 = vector.load %arg8[%c0_46, %c0_47] : memref<129x256xf32, #tpu.memory_space<vmem>>, vector<128x128xf32>
    %c0_48 = arith.constant 0 : index
    %c128_49 = arith.constant 128 : index
    %65 = vector.load %arg8[%c0_48, %c128_49] : memref<129x256xf32, #tpu.memory_space<vmem>>, vector<128x128xf32>
    %c128_50 = arith.constant 128 : index
    %c0_51 = arith.constant 0 : index
    %66 = vector.load %arg8[%c128_50, %c0_51] : memref<129x256xf32, #tpu.memory_space<vmem>>, vector<1x128xf32>
    %c128_52 = arith.constant 128 : index
    %c128_53 = arith.constant 128 : index
    %67 = vector.load %arg8[%c128_52, %c128_53] : memref<129x256xf32, #tpu.memory_space<vmem>>, vector<1x128xf32>
    %c0_54 = arith.constant 0 : index
    %c0_55 = arith.constant 0 : index
    %c0_56 = arith.constant 0 : index
    %68 = vector.load %arg9[%c0_54, %c0_55, %c0_56] : memref<1x129x128xbf16, #tpu.memory_space<vmem>>, vector<1x128x128xbf16>
    %69 = vector.shape_cast %68 : vector<1x128x128xbf16> to vector<128x128xbf16>
    %70 = arith.extf %69 : vector<128x128xbf16> to vector<128x128xf32>
    %c0_57 = arith.constant 0 : index
    %c128_58 = arith.constant 128 : index
    %c0_59 = arith.constant 0 : index
    %71 = vector.load %arg9[%c0_57, %c128_58, %c0_59] : memref<1x129x128xbf16, #tpu.memory_space<vmem>>, vector<1x1x128xbf16>
    %72 = vector.shape_cast %71 : vector<1x1x128xbf16> to vector<1x128xbf16>
    %73 = arith.extf %72 : vector<1x128xbf16> to vector<1x128xf32>
    %74 = arith.mulf %65, %70 : vector<128x128xf32>
    %75 = arith.addf %64, %74 : vector<128x128xf32>
    %76 = arith.mulf %67, %73 : vector<1x128xf32>
    %77 = arith.addf %66, %76 : vector<1x128xf32>
    %78 = arith.truncf %63 : vector<8x128xf32> to vector<8x128xbf16>
    %79 = arith.truncf %75 : vector<128x128xf32> to vector<128x128xbf16>
    %cst_60 = arith.constant dense<0.000000e+00> : vector<8x128xf32>
    %80 = tpu.matmul %78, %79, %cst_60 {dimension_numbers = #tpu.dot_dimension_numbers<[1], [0], [0], [1], [0, 0, 1, 1], [], []>} : vector<8x128xbf16>, vector<128x128xbf16>, vector<8x128xf32> -> vector<8x128xf32>
    %81 = vector.broadcast %77 : vector<1x128xf32> to vector<8x128xf32>
    %82 = arith.addf %80, %81 : vector<8x128xf32>
    %c0_61 = arith.constant 0 : index
    %c0_62 = arith.constant 0 : index
    %c0_63 = arith.constant 0 : index
    %83 = vector.load %arg10[%c0_61, %c0_62, %c0_63] : memref<1x8x128xf32, #tpu.memory_space<vmem>>, vector<1x8x128xf32>
    %84 = vector.shape_cast %83 : vector<1x8x128xf32> to vector<8x128xf32>
    %85 = vector.shape_cast %82 : vector<8x128xf32> to vector<1x8x128xf32>
    tpu.vector_store %arg10[%c0_61, %c0_62, %c0_63], %85 {strides = array<i32>} : memref<1x8x128xf32, #tpu.memory_space<vmem>>, vector<1x8x128xf32>,
    return
  }
  func.func @transform_0(%arg0: i32) -> (i32, i32) {
    %c0_i32 = arith.constant 0 : i32
    %c0_i32_0 = arith.constant 0 : i32
    %c0_i32_1 = arith.constant 0 : i32
    return %c0_i32, %c0_i32_0 : i32, i32
  }
  func.func @transform_1(%arg0: i32) -> (i32, i32) {
    %c0_i32 = arith.constant 0 : i32
    %c0_i32_0 = arith.constant 0 : i32
    %c0_i32_1 = arith.constant 0 : i32
    return %c0_i32, %c0_i32_0 : i32, i32
  }
  func.func @transform_2(%arg0: i32) -> (i32, i32, i32) {
    %c0_i32 = arith.constant 0 : i32
    %c0_i32_0 = arith.constant 0 : i32
    %c0_i32_1 = arith.constant 0 : i32
    return %arg0, %c0_i32, %c0_i32_0 : i32, i32, i32
  }
  func.func @transform_3(%arg0: i32) -> (i32, i32) {
    %c0_i32 = arith.constant 0 : i32
    %c0_i32_0 = arith.constant 0 : i32
    %c0_i32_1 = arith.constant 0 : i32
    return %c0_i32, %c0_i32_0 : i32, i32
  }
  func.func @transform_4(%arg0: i32) -> (i32, i32, i32) {
    %c0_i32 = arith.constant 0 : i32
    %c0_i32_0 = arith.constant 0 : i32
    %c0_i32_1 = arith.constant 0 : i32
    return %arg0, %c0_i32, %c0_i32_0 : i32, i32, i32
  }
  func.func @transform_5(%arg0: i32) -> (i32, i32) {
    %c0_i32 = arith.constant 0 : i32
    %c0_i32_0 = arith.constant 0 : i32
    %c0_i32_1 = arith.constant 0 : i32
    return %c0_i32, %c0_i32_0 : i32, i32
  }
  func.func @transform_6(%arg0: i32) -> (i32, i32, i32) {
    %c0_i32 = arith.constant 0 : i32
    %c0_i32_0 = arith.constant 0 : i32
    %c0_i32_1 = arith.constant 0 : i32
    return %arg0, %c0_i32, %c0_i32_0 : i32, i32, i32
  }
  func.func @transform_7(%arg0: i32) -> (i32, i32) {
    %c0_i32 = arith.constant 0 : i32
    %c0_i32_0 = arith.constant 0 : i32
    %c0_i32_1 = arith.constant 0 : i32
    return %c0_i32, %c0_i32_0 : i32, i32
  }
  func.func @transform_8(%arg0: i32) -> (i32, i32, i32) {
    %c0_i32 = arith.constant 0 : i32
    %c0_i32_0 = arith.constant 0 : i32
    %c0_i32_1 = arith.constant 0 : i32
    return %arg0, %c0_i32, %c0_i32_0 : i32, i32, i32
  }
  func.func @transform_9(%arg0: i32) -> (i32, i32, i32) {
    %c0_i32 = arith.constant 0 : i32
    %c0_i32_0 = arith.constant 0 : i32
    %c0_i32_1 = arith.constant 0 : i32
    return %arg0, %c0_i32, %c0_i32_0 : i32, i32, i32
  }
}

</mosaic_0001>

<llo_original>
// kernel: tpu_custom_call.1
$region0: #{tpu_custom_call.1}
  #allocation0 [shape = 'u32[]', space=smem, size = 0x4, offset = 0x4, fixed_abs, tag = 'smem constant byte address 0x4 - core index']
  #allocation1 [shape = 'u32[72,128]{1,0:T(1,128)}', space=vmem, size = 0x9000, scoped, tag = 'internal scratch']
  %s0 = inlined_call_operand.vmem [shape: f32[8,1024], index: 0, kind: input, shape index: {}]
  %s1 = inlined_call_operand.vmem [shape: f32[1025,256], index: 1, kind: input, shape index: {}]
  %s2 = inlined_call_operand.vmem [shape: bf16[4,1025,128], index: 2, kind: input, shape index: {}]
  %s3 = inlined_call_operand.vmem [shape: f32[129,256], index: 3, kind: input, shape index: {}]
  %s4 = inlined_call_operand.vmem [shape: bf16[4,129,128], index: 4, kind: input, shape index: {}]
  %s5 = inlined_call_operand.vmem [shape: f32[129,256], index: 5, kind: input, shape index: {}]
  %s6 = inlined_call_operand.vmem [shape: bf16[4,129,128], index: 6, kind: input, shape index: {}]
  %s7 = inlined_call_operand.vmem [shape: f32[129,256], index: 7, kind: input, shape index: {}]
  %s8 = inlined_call_operand.vmem [shape: bf16[4,129,128], index: 8, kind: input, shape index: {}]
  %s9 = inlined_call_operand.hbm [shape: f32[4,8,128], index: 9, kind: output, shape index: {}]
  %s10 = sld [smem:[#allocation0]]
  $region69: #{tpu_custom_call.1} parent=0
    _
  %s12 = ssub.s32 1, %s10
  %s13 = scalar_select 0, %s12, %s10
  $region1: #{tpu_custom_call.1} parent=0
    #allocation2 [shape = 'u8[8192]{0}', space=vmem, size = 0x2000, scoped, tag = 'output window, operand 0']
    #allocation3 [shape = 's32[2]{0}', space=sflag, size = 0x8, scoped, tag = 'scoped memory for tpu_custom_call.1']
    %14 = vsyncpa [#allocation3], 0
    %s15 = scalar_lea.sflag [#allocation3], 1
    %16 = vsyncpa %s15, 0
    loop: start=0, step=1, limit=6
    $region2: #{tpu_custom_call.1} parent=1 // loop_pre_header
      _
    $region3: #{tpu_custom_call.1} parent=1 // loop_header
      %s18 = sphi 0, %s22
      %p19 = scmp.ge.s32.totalorder %s18, 6
      %s26 = sphi 0, %s26
      %s28 = sphi 0, %s26
      %s29 = sphi 0, %s28
      %s43 = sphi 0, %s29
      %s47 = sphi 0, %s47
      %s49 = sphi 0, %s47
      %s50 = sphi 0, %s49
      %s64 = sphi 0, %s50
      %s70 = sphi 0, %s72
      %s73 = sphi 0, %s70
      %s74 = sphi 0, %s73
      %s90 = sphi 0, %s74
      %s94 = sphi 0, %s94
      %s96 = sphi 0, %s94
      %s97 = sphi 0, %s96
      %s111 = sphi 0, %s97
      %s117 = sphi 0, %s119
      %s120 = sphi 0, %s117
      %s121 = sphi 0, %s120
      %s137 = sphi 0, %s121
      %s141 = sphi 0, %s141
      %s143 = sphi 0, %s141
      %s144 = sphi 0, %s143
      %s158 = sphi 0, %s144
      %s164 = sphi 0, %s166
      %s167 = sphi 0, %s164
      %s168 = sphi 0, %s167
      %s184 = sphi 0, %s168
      %s188 = sphi 0, %s188
      %s190 = sphi 0, %s188
      %s191 = sphi 0, %s190
      %s205 = sphi 0, %s191
      %s211 = sphi 0, %s213
      %s214 = sphi 0, %s211
      %s215 = sphi 0, %s214
      %s231 = sphi 0, %s215
      %s237 = sphi 0, %s239
      %s240 = sphi 0, %s237
      %s241 = sphi 0, %s240
      %s257 = sphi 0, %s241
    $region4: #{tpu_custom_call.1} parent=1 // loop_header_branch
      %21 = sbr.rel (%p19) target = $region8
    $region5: #{tpu_custom_call.1} parent=1 // loop_body
      %s23 = ssub.s32 %s18, 1
      %s24 = ssub.s32 %s18, 2
      %s25 = sadd.s32 %s18, 1
      %s27 = sadd.s32 %s26, 1
      %p30 = scmp.eq.s32.totalorder %s18, 3
      %p31 = scmp.ne.s32.totalorder %s26, %s28
      %p32 = scmp.eq.s32.totalorder %s18, 0
      %p33 = por %p31, %p32
      %p34 = scmp.ne.s32.totalorder %s26, %s28
      %p35 = scmp.eq.s32.totalorder %s23, 3
      %p36 = por %p34, %p35
      %p37 = scmp.ne.s32.totalorder %s28, %s29
      %p38 = scmp.eq.s32.totalorder %s23, 0
      %p39 = por %p37, %p38
      %p40 = scmp.ne.s32.totalorder %s28, %s29
      %p41 = scmp.eq.s32.totalorder %s24, 3
      %p42 = por %p40, %p41
      %p44 = scmp.ne.s32.totalorder %s29, %s43
      %p45 = scmp.eq.s32.totalorder %s24, 0
      %p46 = por %p44, %p45
      %s48 = sadd.s32 %s47, 1
      %p51 = scmp.eq.s32.totalorder %s18, 3
      %p52 = scmp.ne.s32.totalorder %s47, %s49
      %p53 = scmp.eq.s32.totalorder %s18, 0
      %p54 = por %p52, %p53
      %p55 = scmp.ne.s32.totalorder %s47, %s49
      %p56 = scmp.eq.s32.totalorder %s23, 3
      %p57 = por %p55, %p56
      %p58 = scmp.ne.s32.totalorder %s49, %s50
      %p59 = scmp.eq.s32.totalorder %s23, 0
      %p60 = por %p58, %p59
      %p61 = scmp.ne.s32.totalorder %s49, %s50
      %p62 = scmp.eq.s32.totalorder %s24, 3
      %p63 = por %p61, %p62
      %p65 = scmp.ne.s32.totalorder %s50, %s64
      %p66 = scmp.eq.s32.totalorder %s24, 0
      %p67 = por %p65, %p66
      %s68 = ssub.s32 %s18, %s25
      %p69 = scmp.eq.s32.totalorder %s68, 0
      %s71 = sadd.s32 %s70, 1
      %s72 = scalar_select %p69, %s70, %s71
      %p75 = pneg %p69
      %p76 = scmp.eq.s32.totalorder %s18, 3
      %p77 = por %p75, %p76
      %p78 = scmp.ne.s32.totalorder %s70, %s73
      %p79 = scmp.eq.s32.totalorder %s18, 0
      %p80 = por %p78, %p79
      %p81 = scmp.ne.s32.totalorder %s70, %s73
      %p82 = scmp.eq.s32.totalorder %s23, 3
      %p83 = por %p81, %p82
      %p84 = scmp.ne.s32.totalorder %s73, %s74
      %p85 = scmp.eq.s32.totalorder %s23, 0
      %p86 = por %p84, %p85
      %p87 = scmp.ne.s32.totalorder %s73, %s74
      %p88 = scmp.eq.s32.totalorder %s24, 3
      %p89 = por %p87, %p88
      %p91 = scmp.ne.s32.totalorder %s74, %s90
      %p92 = scmp.eq.s32.totalorder %s24, 0
      %p93 = por %p91, %p92
      %s95 = sadd.s32 %s94, 1
      %p98 = scmp.eq.s32.totalorder %s18, 3
      %p99 = scmp.ne.s32.totalorder %s94, %s96
      %p100 = scmp.eq.s32.totalorder %s18, 0
      %p101 = por %p99, %p100
      %p102 = scmp.ne.s32.totalorder %s94, %s96
      %p103 = scmp.eq.s32.totalorder %s23, 3
      %p104 = por %p102, %p103
      %p105 = scmp.ne.s32.totalorder %s96, %s97
      %p106 = scmp.eq.s32.totalorder %s23, 0
      %p107 = por %p105, %p106
      %p108 = scmp.ne.s32.totalorder %s96, %s97
      %p109 = scmp.eq.s32.totalorder %s24, 3
      %p110 = por %p108, %p109
      %p112 = scmp.ne.s32.totalorder %s97, %s111
      %p113 = scmp.eq.s32.totalorder %s24, 0
      %p114 = por %p112, %p113
      %s115 = ssub.s32 %s18, %s25
      %p116 = scmp.eq.s32.totalorder %s115, 0
      %s118 = sadd.s32 %s117, 1
      %s119 = scalar_select %p116, %s117, %s118
      %p122 = pneg %p116
      %p123 = scmp.eq.s32.totalorder %s18, 3
      %p124 = por %p122, %p123
      %p125 = scmp.ne.s32.totalorder %s117, %s120
      %p126 = scmp.eq.s32.totalorder %s18, 0
      %p127 = por %p125, %p126
      %p128 = scmp.ne.s32.totalorder %s117, %s120
      %p129 = scmp.eq.s32.totalorder %s23, 3
      %p130 = por %p128, %p129
      %p131 = scmp.ne.s32.totalorder %s120, %s121
      %p132 = scmp.eq.s32.totalorder %s23, 0
      %p133 = por %p131, %p132
      %p134 = scmp.ne.s32.totalorder %s120, %s121
      %p135 = scmp.eq.s32.totalorder %s24, 3
      %p136 = por %p134, %p135
      %p138 = scmp.ne.s32.totalorder %s121, %s137
      %p139 = scmp.eq.s32.totalorder %s24, 0
      %p140 = por %p138, %p139
      %s142 = sadd.s32 %s141, 1
      %p145 = scmp.eq.s32.totalorder %s18, 3
      %p146 = scmp.ne.s32.totalorder %s141, %s143
      %p147 = scmp.eq.s32.totalorder %s18, 0
      %p148 = por %p146, %p147
      %p149 = scmp.ne.s32.totalorder %s141, %s143
      %p150 = scmp.eq.s32.totalorder %s23, 3
      %p151 = por %p149, %p150
      %p152 = scmp.ne.s32.totalorder %s143, %s144
      %p153 = scmp.eq.s32.totalorder %s23, 0
      %p154 = por %p152, %p153
      %p155 = scmp.ne.s32.totalorder %s143, %s144
      %p156 = scmp.eq.s32.totalorder %s24, 3
      %p157 = por %p155, %p156
      %p159 = scmp.ne.s32.totalorder %s144, %s158
      %p160 = scmp.eq.s32.totalorder %s24, 0
      %p161 = por %p159, %p160
      %s162 = ssub.s32 %s18, %s25
      %p163 = scmp.eq.s32.totalorder %s162, 0
      %s165 = sadd.s32 %s164, 1
      %s166 = scalar_select %p163, %s164, %s165
      %p169 = pneg %p163
      %p170 = scmp.eq.s32.totalorder %s18, 3
      %p171 = por %p169, %p170
      %p172 = scmp.ne.s32.totalorder %s164, %s167
      %p173 = scmp.eq.s32.totalorder %s18, 0
      %p174 = por %p172, %p173
      %p175 = scmp.ne.s32.totalorder %s164, %s167
      %p176 = scmp.eq.s32.totalorder %s23, 3
      %p177 = por %p175, %p176
      %p178 = scmp.ne.s32.totalorder %s167, %s168
      %p179 = scmp.eq.s32.totalorder %s23, 0
      %p180 = por %p178, %p179
      %p181 = scmp.ne.s32.totalorder %s167, %s168
      %p182 = scmp.eq.s32.totalorder %s24, 3
      %p183 = por %p181, %p182
      %p185 = scmp.ne.s32.totalorder %s168, %s184
      %p186 = scmp.eq.s32.totalorder %s24, 0
      %p187 = por %p185, %p186
      %s189 = sadd.s32 %s188, 1
      %p192 = scmp.eq.s32.totalorder %s18, 3
      %p193 = scmp.ne.s32.totalorder %s188, %s190
      %p194 = scmp.eq.s32.totalorder %s18, 0
      %p195 = por %p193, %p194
      %p196 = scmp.ne.s32.totalorder %s188, %s190
      %p197 = scmp.eq.s32.totalorder %s23, 3
      %p198 = por %p196, %p197
      %p199 = scmp.ne.s32.totalorder %s190, %s191
      %p200 = scmp.eq.s32.totalorder %s23, 0
      %p201 = por %p199, %p200
      %p202 = scmp.ne.s32.totalorder %s190, %s191
      %p203 = scmp.eq.s32.totalorder %s24, 3
      %p204 = por %p202, %p203
      %p206 = scmp.ne.s32.totalorder %s191, %s205
      %p207 = scmp.eq.s32.totalorder %s24, 0
      %p208 = por %p206, %p207
      %s209 = ssub.s32 %s18, %s25
      %p210 = scmp.eq.s32.totalorder %s209, 0
      %s212 = sadd.s32 %s211, 1
      %s213 = scalar_select %p210, %s211, %s212
      %p216 = pneg %p210
      %p217 = scmp.eq.s32.totalorder %s18, 3
      %p218 = por %p216, %p217
      %p219 = scmp.ne.s32.totalorder %s211, %s214
      %p220 = scmp.eq.s32.totalorder %s18, 0
      %p221 = por %p219, %p220
      %p222 = scmp.ne.s32.totalorder %s211, %s214
      %p223 = scmp.eq.s32.totalorder %s23, 3
      %p224 = por %p222, %p223
      %p225 = scmp.ne.s32.totalorder %s214, %s215
      %p226 = scmp.eq.s32.totalorder %s23, 0
      %p227 = por %p225, %p226
      %p228 = scmp.ne.s32.totalorder %s214, %s215
      %p229 = scmp.eq.s32.totalorder %s24, 3
      %p230 = por %p228, %p229
      %p232 = scmp.ne.s32.totalorder %s215, %s231
      %p233 = scmp.eq.s32.totalorder %s24, 0
      %p234 = por %p232, %p233
      %s235 = ssub.s32 %s18, %s25
      %p236 = scmp.eq.s32.totalorder %s235, 0
      %s238 = sadd.s32 %s237, 1
      %s239 = scalar_select %p236, %s237, %s238
      %p242 = pneg %p236
      %p243 = scmp.eq.s32.totalorder %s18, 3
      %p244 = por %p242, %p243
      %p245 = scmp.ne.s32.totalorder %s237, %s240
      %p246 = scmp.eq.s32.totalorder %s18, 0
      %p247 = por %p245, %p246
      %p248 = scmp.ne.s32.totalorder %s237, %s240
      %p249 = scmp.eq.s32.totalorder %s23, 3
      %p250 = por %p248, %p249
      %p251 = scmp.ne.s32.totalorder %s240, %s241
      %p252 = scmp.eq.s32.totalorder %s23, 0
      %p253 = por %p251, %p252
      %p254 = scmp.ne.s32.totalorder %s240, %s241
      %p255 = scmp.eq.s32.totalorder %s24, 3
      %p256 = por %p254, %p255
      %p258 = scmp.ne.s32.totalorder %s241, %s257
      %p259 = scmp.eq.s32.totalorder %s24, 0
      %p260 = por %p258, %p259
      %p261 = scmp.le.s32.totalorder 1, %s18
      %p262 = scmp.lt.s32.totalorder %s18, 5
      %p263 = pnand %p261, %p262
      %p264 = pneg %p263
      // Predicated region
      $region9: #{tpu_custom_call.1} parent=5 // pred_check
        _
      $region10: #{tpu_custom_call.1} parent=5 // pred_check_branch
        %266 = sbr.rel (%p263) target = $region12
      $region11: #{tpu_custom_call.1} parent=5 // pred_region
        %s267 = ssub.s32 %s18, 1
        // Predicated region
        $region13: #{tpu_custom_call.1} parent=11 // pred_check
          %p268 = pneg %p39
        $region14: #{tpu_custom_call.1} parent=11 // pred_check_branch
          %270 = sbr.rel (%p268) target = $region16
        $region15: #{tpu_custom_call.1} parent=11 // pred_region
          _
        $region16: #{tpu_custom_call.1} parent=11 // pred_fallthru
          _
        // Predicated region
        $region17: #{tpu_custom_call.1} parent=11 // pred_check
          %p271 = pneg %p60
        $region18: #{tpu_custom_call.1} parent=11 // pred_check_branch
          %273 = sbr.rel (%p271) target = $region20
        $region19: #{tpu_custom_call.1} parent=11 // pred_region
          _
        $region20: #{tpu_custom_call.1} parent=11 // pred_fallthru
          _
        // Predicated region
        $region21: #{tpu_custom_call.1} parent=11 // pred_check
          %p274 = pneg %p107
        $region22: #{tpu_custom_call.1} parent=11 // pred_check_branch
          %276 = sbr.rel (%p274) target = $region24
        $region23: #{tpu_custom_call.1} parent=11 // pred_region
          _
        $region24: #{tpu_custom_call.1} parent=11 // pred_fallthru
          _
        // Predicated region
        $region25: #{tpu_custom_call.1} parent=11 // pred_check
          %p277 = pneg %p154
        $region26: #{tpu_custom_call.1} parent=11 // pred_check_branch
          %279 = sbr.rel (%p277) target = $region28
        $region27: #{tpu_custom_call.1} parent=11 // pred_region
          _
        $region28: #{tpu_custom_call.1} parent=11 // pred_fallthru
          _
        // Predicated region
        $region29: #{tpu_custom_call.1} parent=11 // pred_check
          %p280 = pneg %p201
        $region30: #{tpu_custom_call.1} parent=11 // pred_check_branch
          %282 = sbr.rel (%p280) target = $region32
        $region31: #{tpu_custom_call.1} parent=11 // pred_region
          _
        $region32: #{tpu_custom_call.1} parent=11 // pred_fallthru
          _
      $region12: #{tpu_custom_call.1} parent=5 // pred_fallthru
        _
      %p283 = scmp.lt.s32.totalorder %s18, 4
      // Predicated region
      $region33: #{tpu_custom_call.1} parent=5 // pred_check
        %p284 = pneg %p283
      $region34: #{tpu_custom_call.1} parent=5 // pred_check_branch
        %286 = sbr.rel (%p284) target = $region36
      $region35: #{tpu_custom_call.1} parent=5 // pred_region
        // Predicated region
        $region37: #{tpu_custom_call.1} parent=35 // pred_check
          %p287 = pneg %p80
        $region38: #{tpu_custom_call.1} parent=35 // pred_check_branch
          %289 = sbr.rel (%p287) target = $region40
        $region39: #{tpu_custom_call.1} parent=35 // pred_region
          %p290 = scmp.lt.s32.totalorder %s18, 3
          %s291 = scalar_select %p290, %s18, 3
          %s292 = smul.addr %s291, 129
          %s293 = smul.addr %s292, 4
          %s294 = scalar_lea.vmem %s2, %s293
        $region40: #{tpu_custom_call.1} parent=35 // pred_fallthru
          _
        // Predicated region
        $region41: #{tpu_custom_call.1} parent=35 // pred_check
          %p295 = pneg %p127
        $region42: #{tpu_custom_call.1} parent=35 // pred_check_branch
          %297 = sbr.rel (%p295) target = $region44
        $region43: #{tpu_custom_call.1} parent=35 // pred_region
          %p298 = scmp.lt.s32.totalorder %s18, 3
          %s299 = scalar_select %p298, %s18, 3
          %s300 = smul.addr %s299, 17
          %s301 = smul.addr %s300, 4
          %s302 = scalar_lea.vmem %s4, %s301
        $region44: #{tpu_custom_call.1} parent=35 // pred_fallthru
          _
        // Predicated region
        $region45: #{tpu_custom_call.1} parent=35 // pred_check
          %p303 = pneg %p174
        $region46: #{tpu_custom_call.1} parent=35 // pred_check_branch
          %305 = sbr.rel (%p303) target = $region48
        $region47: #{tpu_custom_call.1} parent=35 // pred_region
          %p306 = scmp.lt.s32.totalorder %s18, 3
          %s307 = scalar_select %p306, %s18, 3
          %s308 = smul.addr %s307, 17
          %s309 = smul.addr %s308, 4
          %s310 = scalar_lea.vmem %s6, %s309
        $region48: #{tpu_custom_call.1} parent=35 // pred_fallthru
          _
        // Predicated region
        $region49: #{tpu_custom_call.1} parent=35 // pred_check
          %p311 = pneg %p221
        $region50: #{tpu_custom_call.1} parent=35 // pred_check_branch
          %313 = sbr.rel (%p311) target = $region52
        $region51: #{tpu_custom_call.1} parent=35 // pred_region
          %p314 = scmp.lt.s32.totalorder %s18, 3
          %s315 = scalar_select %p314, %s18, 3
          %s316 = smul.addr %s315, 17
          %s317 = smul.addr %s316, 4
          %s318 = scalar_lea.vmem %s8, %s317
        $region52: #{tpu_custom_call.1} parent=35 // pred_fallthru
          _
      $region36: #{tpu_custom_call.1} parent=5 // pred_fallthru
        _
      %p319 = scmp.le.s32.totalorder 1, %s18
      %p320 = scmp.lt.s32.totalorder %s18, 5
      %p321 = pnand %p319, %p320
      %p322 = pneg %p321
      // Predicated region
      $region53: #{tpu_custom_call.1} parent=5 // pred_check
        _
      $region54: #{tpu_custom_call.1} parent=5 // pred_check_branch
        %324 = sbr.rel (%p321) target = $region56
      $region55: #{tpu_custom_call.1} parent=5 // pred_region
        %s325 = ssub.s32 %s18, 1
        %p326 = pneg %p39
        %p327 = pneg %p36
        %p328 = pneg %p60
        %p329 = pneg %p57
        %p330 = scmp.lt.s32.totalorder %s23, 3
        %s331 = scalar_select %p330, %s23, 3
        %s332 = smul.addr %s331, 129
        %s333 = smul.addr %s332, 4
        %s334 = scalar_lea.vmem %s2, %s333
        %p335 = pneg %p86
        %p336 = pneg %p83
        %p337 = pneg %p107
        %p338 = pneg %p104
        %p339 = scmp.lt.s32.totalorder %s23, 3
        %s340 = scalar_select %p339, %s23, 3
        %s341 = smul.addr %s340, 17
        %s342 = smul.addr %s341, 4
        %s343 = scalar_lea.vmem %s4, %s342
        %p344 = pneg %p133
        %p345 = pneg %p130
        %p346 = pneg %p154
        %p347 = pneg %p151
        %p348 = scmp.lt.s32.totalorder %s23, 3
        %s349 = scalar_select %p348, %s23, 3
        %s350 = smul.addr %s349, 17
        %s351 = smul.addr %s350, 4
        %s352 = scalar_lea.vmem %s6, %s351
        %p353 = pneg %p180
        %p354 = pneg %p177
        %p355 = pneg %p201
        %p356 = pneg %p198
        %p357 = scmp.lt.s32.totalorder %s23, 3
        %s358 = scalar_select %p357, %s23, 3
        %s359 = smul.addr %s358, 17
        %s360 = smul.addr %s359, 4
        %s361 = scalar_lea.vmem %s8, %s360
        %p362 = pneg %p227
        %p363 = pneg %p224
        %p364 = pneg %p253
        %p365 = pneg %p250
        %s366 = sand.u32 %s240, 1
        %s367 = scalar_lea.sflag [#allocation3], %s366
        %s368 = sand.u32 %s240, 1
        %s369 = smul.addr %s368, 8
        %s370 = scalar_lea.vmem [#allocation2], %s369
        %p371 = scmp.lt.s32.totalorder %s23, 3
        %s372 = scalar_select %p371, %s23, 3
        %s373 = smul.addr %s372, 129
        %s374 = smul.addr %s373, 4
        %s375 = scalar_lea.vmem %s2, %s374
        %p376 = scmp.lt.s32.totalorder %s23, 3
        %s377 = scalar_select %p376, %s23, 3
        %s378 = smul.addr %s377, 17
        %s379 = smul.addr %s378, 4
        %s380 = scalar_lea.vmem %s4, %s379
        %p381 = scmp.lt.s32.totalorder %s23, 3
        %s382 = scalar_select %p381, %s23, 3
        %s383 = smul.addr %s382, 17
        %s384 = smul.addr %s383, 4
        %s385 = scalar_lea.vmem %s6, %s384
        %p386 = scmp.lt.s32.totalorder %s23, 3
        %s387 = scalar_select %p386, %s23, 3
        %s388 = smul.addr %s387, 17
        %s389 = smul.addr %s388, 4
        %s390 = scalar_lea.vmem %s8, %s389
        %v391 = vld [vmem:[%s0] sm:$0xff]
        %v392 = vld [vmem:[%s0 + $0x8] sm:$0xff]
        %v393 = vld [vmem:[%s0 + $0x10] sm:$0xff]
        %v394 = vld [vmem:[%s0 + $0x18] sm:$0xff]
        %v395 = vld [vmem:[%s0 + $0x20] sm:$0xff]
        %v396 = vld [vmem:[%s0 + $0x28] sm:$0xff]
        %v397 = vld [vmem:[%s0 + $0x30] sm:$0xff]
        %v398 = vld [vmem:[%s0 + $0x38] sm:$0xff]
        %v399 = vld [vmem:[%s1] sm:$0xff]
        %v400 = vld [vmem:[%s1 + $0x10] sm:$0xff]
        %v401 = vld [vmem:[%s1 + $0x20] sm:$0xff]
        %v402 = vld [vmem:[%s1 + $0x30] sm:$0xff]
        %v403 = vld [vmem:[%s1 + $0x40] sm:$0xff]
        %v404 = vld [vmem:[%s1 + $0x50] sm:$0xff]
        %v405 = vld [vmem:[%s1 + $0x60] sm:$0xff]
        %v406 = vld [vmem:[%s1 + $0x70] sm:$0xff]
        %v407 = vld [vmem:[%s1 + $0x80] sm:$0xff]
        %v408 = vld [vmem:[%s1 + $0x90] sm:$0xff]
        %v409 = vld [vmem:[%s1 + $0xa0] sm:$0xff]
        %v410 = vld [vmem:[%s1 + $0xb0] sm:$0xff]
        %v411 = vld [vmem:[%s1 + $0xc0] sm:$0xff]
        %v412 = vld [vmem:[%s1 + $0xd0] sm:$0xff]
        %v413 = vld [vmem:[%s1 + $0xe0] sm:$0xff]
        %v414 = vld [vmem:[%s1 + $0xf0] sm:$0xff]
        %v415 = vld [vmem:[%s1 + $0x100] sm:$0xff]
        %v416 = vld [vmem:[%s1 + $0x110] sm:$0xff]
        %v417 = vld [vmem:[%s1 + $0x120] sm:$0xff]
        %v418 = vld [vmem:[%s1 + $0x130] sm:$0xff]
        %v419 = vld [vmem:[%s1 + $0x140] sm:$0xff]
        %v420 = vld [vmem:[%s1 + $0x150] sm:$0xff]
        %v421 = vld [vmem:[%s1 + $0x160] sm:$0xff]
        %v422 = vld [vmem:[%s1 + $0x170] sm:$0xff]
        %v423 = vld [vmem:[%s1 + $0x180] sm:$0xff]
        %v424 = vld [vmem:[%s1 + $0x190] sm:$0xff]
        %v425 = vld [vmem:[%s1 + $0x1a0] sm:$0xff]
        %v426 = vld [vmem:[%s1 + $0x1b0] sm:$0xff]
        %v427 = vld [vmem:[%s1 + $0x1c0] sm:$0xff]
        %v428 = vld [vmem:[%s1 + $0x1d0] sm:$0xff]
        %v429 = vld [vmem:[%s1 + $0x1e0] sm:$0xff]
        %v430 = vld [vmem:[%s1 + $0x1f0] sm:$0xff]
        %v431 = vld [vmem:[%s1 + $0x200] sm:$0xff]
        %v432 = vld [vmem:[%s1 + $0x210] sm:$0xff]
        %v433 = vld [vmem:[%s1 + $0x220] sm:$0xff]
        %v434 = vld [vmem:[%s1 + $0x230] sm:$0xff]
        %v435 = vld [vmem:[%s1 + $0x240] sm:$0xff]
        %v436 = vld [vmem:[%s1 + $0x250] sm:$0xff]
        %v437 = vld [vmem:[%s1 + $0x260] sm:$0xff]
        %v438 = vld [vmem:[%s1 + $0x270] sm:$0xff]
        %v439 = vld [vmem:[%s1 + $0x280] sm:$0xff]
        %v440 = vld [vmem:[%s1 + $0x290] sm:$0xff]
        %v441 = vld [vmem:[%s1 + $0x2a0] sm:$0xff]
        %v442 = vld [vmem:[%s1 + $0x2b0] sm:$0xff]
        %v443 = vld [vmem:[%s1 + $0x2c0] sm:$0xff]
        %v444 = vld [vmem:[%s1 + $0x2d0] sm:$0xff]
        %v445 = vld [vmem:[%s1 + $0x2e0] sm:$0xff]
        %v446 = vld [vmem:[%s1 + $0x2f0] sm:$0xff]
        %v447 = vld [vmem:[%s1 + $0x300] sm:$0xff]
        %v448 = vld [vmem:[%s1 + $0x310] sm:$0xff]
        %v449 = vld [vmem:[%s1 + $0x320] sm:$0xff]
        %v450 = vld [vmem:[%s1 + $0x330] sm:$0xff]
        %v451 = vld [vmem:[%s1 + $0x340] sm:$0xff]
        %v452 = vld [vmem:[%s1 + $0x350] sm:$0xff]
        %v453 = vld [vmem:[%s1 + $0x360] sm:$0xff]
        %v454 = vld [vmem:[%s1 + $0x370] sm:$0xff]
        %v455 = vld [vmem:[%s1 + $0x380] sm:$0xff]
        %v456 = vld [vmem:[%s1 + $0x390] sm:$0xff]
        %v457 = vld [vmem:[%s1 + $0x3a0] sm:$0xff]
        %v458 = vld [vmem:[%s1 + $0x3b0] sm:$0xff]
        %v459 = vld [vmem:[%s1 + $0x3c0] sm:$0xff]
        %v460 = vld [vmem:[%s1 + $0x3d0] sm:$0xff]
        %v461 = vld [vmem:[%s1 + $0x3e0] sm:$0xff]
        %v462 = vld [vmem:[%s1 + $0x3f0] sm:$0xff]
        %v463 = vld [vmem:[%s1 + $0x400] sm:$0xff]
        %v464 = vld [vmem:[%s1 + $0x410] sm:$0xff]
        %v465 = vld [vmem:[%s1 + $0x420] sm:$0xff]
        %v466 = vld [vmem:[%s1 + $0x430] sm:$0xff]
        %v467 = vld [vmem:[%s1 + $0x440] sm:$0xff]
        %v468 = vld [vmem:[%s1 + $0x450] sm:$0xff]
        %v469 = vld [vmem:[%s1 + $0x460] sm:$0xff]
        %v470 = vld [vmem:[%s1 + $0x470] sm:$0xff]
        %v471 = vld [vmem:[%s1 + $0x480] sm:$0xff]
        %v472 = vld [vmem:[%s1 + $0x490] sm:$0xff]
        %v473 = vld [vmem:[%s1 + $0x4a0] sm:$0xff]
        %v474 = vld [vmem:[%s1 + $0x4b0] sm:$0xff]
        %v475 = vld [vmem:[%s1 + $0x4c0] sm:$0xff]
        %v476 = vld [vmem:[%s1 + $0x4d0] sm:$0xff]
        %v477 = vld [vmem:[%s1 + $0x4e0] sm:$0xff]
        %v478 = vld [vmem:[%s1 + $0x4f0] sm:$0xff]
        %v479 = vld [vmem:[%s1 + $0x500] sm:$0xff]
        %v480 = vld [vmem:[%s1 + $0x510] sm:$0xff]
        %v481 = vld [vmem:[%s1 + $0x520] sm:$0xff]
        %v482 = vld [vmem:[%s1 + $0x530] sm:$0xff]
        %v483 = vld [vmem:[%s1 + $0x540] sm:$0xff]
        %v484 = vld [vmem:[%s1 + $0x550] sm:$0xff]
        %v485 = vld [vmem:[%s1 + $0x560] sm:$0xff]
        %v486 = vld [vmem:[%s1 + $0x570] sm:$0xff]
        %v487 = vld [vmem:[%s1 + $0x580] sm:$0xff]
        %v488 = vld [vmem:[%s1 + $0x590] sm:$0xff]
        %v489 = vld [vmem:[%s1 + $0x5a0] sm:$0xff]
        %v490 = vld [vmem:[%s1 + $0x5b0] sm:$0xff]
        %v491 = vld [vmem:[%s1 + $0x5c0] sm:$0xff]
        %v492 = vld [vmem:[%s1 + $0x5d0] sm:$0xff]
        %v493 = vld [vmem:[%s1 + $0x5e0] sm:$0xff]
        %v494 = vld [vmem:[%s1 + $0x5f0] sm:$0xff]
        %v495 = vld [vmem:[%s1 + $0x600] sm:$0xff]
        %v496 = vld [vmem:[%s1 + $0x610] sm:$0xff]
        %v497 = vld [vmem:[%s1 + $0x620] sm:$0xff]
        %v498 = vld [vmem:[%s1 + $0x630] sm:$0xff]
        %v499 = vld [vmem:[%s1 + $0x640] sm:$0xff]
        %v500 = vld [vmem:[%s1 + $0x650] sm:$0xff]
        %v501 = vld [vmem:[%s1 + $0x660] sm:$0xff]
        %v502 = vld [vmem:[%s1 + $0x670] sm:$0xff]
        %v503 = vld [vmem:[%s1 + $0x680] sm:$0xff]
        %v504 = vld [vmem:[%s1 + $0x690] sm:$0xff]
        %v505 = vld [vmem:[%s1 + $0x6a0] sm:$0xff]
        %v506 = vld [vmem:[%s1 + $0x6b0] sm:$0xff]
        %v507 = vld [vmem:[%s1 + $0x6c0] sm:$0xff]
        %v508 = vld [vmem:[%s1 + $0x6d0] sm:$0xff]
        %v509 = vld [vmem:[%s1 + $0x6e0] sm:$0xff]
        %v510 = vld [vmem:[%s1 + $0x6f0] sm:$0xff]
        %v511 = vld [vmem:[%s1 + $0x700] sm:$0xff]
        %v512 = vld [vmem:[%s1 + $0x710] sm:$0xff]
        %v513 = vld [vmem:[%s1 + $0x720] sm:$0xff]
        %v514 = vld [vmem:[%s1 + $0x730] sm:$0xff]
        %v515 = vld [vmem:[%s1 + $0x740] sm:$0xff]
        %v516 = vld [vmem:[%s1 + $0x750] sm:$0xff]
        %v517 = vld [vmem:[%s1 + $0x760] sm:$0xff]
        %v518 = vld [vmem:[%s1 + $0x770] sm:$0xff]
        %v519 = vld [vmem:[%s1 + $0x780] sm:$0xff]
        %v520 = vld [vmem:[%s1 + $0x790] sm:$0xff]
        %v521 = vld [vmem:[%s1 + $0x7a0] sm:$0xff]
        %v522 = vld [vmem:[%s1 + $0x7b0] sm:$0xff]
        %v523 = vld [vmem:[%s1 + $0x7c0] sm:$0xff]
        %v524 = vld [vmem:[%s1 + $0x7d0] sm:$0xff]
        %v525 = vld [vmem:[%s1 + $0x7e0] sm:$0xff]
        %v526 = vld [vmem:[%s1 + $0x7f0] sm:$0xff]
        %v527 = vld [vmem:[%s1 + $0x8] sm:$0xff]
        %v528 = vld [vmem:[%s1 + $0x18] sm:$0xff]
        %v529 = vld [vmem:[%s1 + $0x28] sm:$0xff]
        %v530 = vld [vmem:[%s1 + $0x38] sm:$0xff]
        %v531 = vld [vmem:[%s1 + $0x48] sm:$0xff]
        %v532 = vld [vmem:[%s1 + $0x58] sm:$0xff]
        %v533 = vld [vmem:[%s1 + $0x68] sm:$0xff]
        %v534 = vld [vmem:[%s1 + $0x78] sm:$0xff]
        %v535 = vld [vmem:[%s1 + $0x88] sm:$0xff]
        %v536 = vld [vmem:[%s1 + $0x98] sm:$0xff]
        %v537 = vld [vmem:[%s1 + $0xa8] sm:$0xff]
        %v538 = vld [vmem:[%s1 + $0xb8] sm:$0xff]
        %v539 = vld [vmem:[%s1 + $0xc8] sm:$0xff]
        %v540 = vld [vmem:[%s1 + $0xd8] sm:$0xff]
        %v541 = vld [vmem:[%s1 + $0xe8] sm:$0xff]
        %v542 = vld [vmem:[%s1 + $0xf8] sm:$0xff]
        %v543 = vld [vmem:[%s1 + $0x108] sm:$0xff]
        %v544 = vld [vmem:[%s1 + $0x118] sm:$0xff]
        %v545 = vld [vmem:[%s1 + $0x128] sm:$0xff]
        %v546 = vld [vmem:[%s1 + $0x138] sm:$0xff]
        %v547 = vld [vmem:[%s1 + $0x148] sm:$0xff]
        %v548 = vld [vmem:[%s1 + $0x158] sm:$0xff]
        %v549 = vld [vmem:[%s1 + $0x168] sm:$0xff]
        %v550 = vld [vmem:[%s1 + $0x178] sm:$0xff]
        %v551 = vld [vmem:[%s1 + $0x188] sm:$0xff]
        %v552 = vld [vmem:[%s1 + $0x198] sm:$0xff]
        %v553 = vld [vmem:[%s1 + $0x1a8] sm:$0xff]
        %v554 = vld [vmem:[%s1 + $0x1b8] sm:$0xff]
        %v555 = vld [vmem:[%s1 + $0x1c8] sm:$0xff]
        %v556 = vld [vmem:[%s1 + $0x1d8] sm:$0xff]
        %v557 = vld [vmem:[%s1 + $0x1e8] sm:$0xff]
        %v558 = vld [vmem:[%s1 + $0x1f8] sm:$0xff]
        %v559 = vld [vmem:[%s1 + $0x208] sm:$0xff]
        %v560 = vld [vmem:[%s1 + $0x218] sm:$0xff]
        %v561 = vld [vmem:[%s1 + $0x228] sm:$0xff]
        %v562 = vld [vmem:[%s1 + $0x238] sm:$0xff]
        %v563 = vld [vmem:[%s1 + $0x248] sm:$0xff]
        %v564 = vld [vmem:[%s1 + $0x258] sm:$0xff]
        %v565 = vld [vmem:[%s1 + $0x268] sm:$0xff]
        %v566 = vld [vmem:[%s1 + $0x278] sm:$0xff]
        %v567 = vld [vmem:[%s1 + $0x288] sm:$0xff]
        %v568 = vld [vmem:[%s1 + $0x298] sm:$0xff]
        %v569 = vld [vmem:[%s1 + $0x2a8] sm:$0xff]
        %v570 = vld [vmem:[%s1 + $0x2b8] sm:$0xff]
        %v571 = vld [vmem:[%s1 + $0x2c8] sm:$0xff]
        %v572 = vld [vmem:[%s1 + $0x2d8] sm:$0xff]
        %v573 = vld [vmem:[%s1 + $0x2e8] sm:$0xff]
        %v574 = vld [vmem:[%s1 + $0x2f8] sm:$0xff]
        %v575 = vld [vmem:[%s1 + $0x308] sm:$0xff]
        %v576 = vld [vmem:[%s1 + $0x318] sm:$0xff]
        %v577 = vld [vmem:[%s1 + $0x328] sm:$0xff]
        %v578 = vld [vmem:[%s1 + $0x338] sm:$0xff]
        %v579 = vld [vmem:[%s1 + $0x348] sm:$0xff]
        %v580 = vld [vmem:[%s1 + $0x358] sm:$0xff]
        %v581 = vld [vmem:[%s1 + $0x368] sm:$0xff]
        %v582 = vld [vmem:[%s1 + $0x378] sm:$0xff]
        %v583 = vld [vmem:[%s1 + $0x388] sm:$0xff]
        %v584 = vld [vmem:[%s1 + $0x398] sm:$0xff]
        %v585 = vld [vmem:[%s1 + $0x3a8] sm:$0xff]
        %v586 = vld [vmem:[%s1 + $0x3b8] sm:$0xff]
        %v587 = vld [vmem:[%s1 + $0x3c8] sm:$0xff]
        %v588 = vld [vmem:[%s1 + $0x3d8] sm:$0xff]
        %v589 = vld [vmem:[%s1 + $0x3e8] sm:$0xff]
        %v590 = vld [vmem:[%s1 + $0x3f8] sm:$0xff]
        %v591 = vld [vmem:[%s1 + $0x408] sm:$0xff]
        %v592 = vld [vmem:[%s1 + $0x418] sm:$0xff]
        %v593 = vld [vmem:[%s1 + $0x428] sm:$0xff]
        %v594 = vld [vmem:[%s1 + $0x438] sm:$0xff]
        %v595 = vld [vmem:[%s1 + $0x448] sm:$0xff]
        %v596 = vld [vmem:[%s1 + $0x458] sm:$0xff]
        %v597 = vld [vmem:[%s1 + $0x468] sm:$0xff]
        %v598 = vld [vmem:[%s1 + $0x478] sm:$0xff]
        %v599 = vld [vmem:[%s1 + $0x488] sm:$0xff]
        %v600 = vld [vmem:[%s1 + $0x498] sm:$0xff]
        %v601 = vld [vmem:[%s1 + $0x4a8] sm:$0xff]
        %v602 = vld [vmem:[%s1 + $0x4b8] sm:$0xff]
        %v603 = vld [vmem:[%s1 + $0x4c8] sm:$0xff]
        %v604 = vld [vmem:[%s1 + $0x4d8] sm:$0xff]
        %v605 = vld [vmem:[%s1 + $0x4e8] sm:$0xff]
        %v606 = vld [vmem:[%s1 + $0x4f8] sm:$0xff]
        %v607 = vld [vmem:[%s1 + $0x508] sm:$0xff]
        %v608 = vld [vmem:[%s1 + $0x518] sm:$0xff]
        %v609 = vld [vmem:[%s1 + $0x528] sm:$0xff]
        %v610 = vld [vmem:[%s1 + $0x538] sm:$0xff]
        %v611 = vld [vmem:[%s1 + $0x548] sm:$0xff]
        %v612 = vld [vmem:[%s1 + $0x558] sm:$0xff]
        %v613 = vld [vmem:[%s1 + $0x568] sm:$0xff]
        %v614 = vld [vmem:[%s1 + $0x578] sm:$0xff]
        %v615 = vld [vmem:[%s1 + $0x588] sm:$0xff]
        %v616 = vld [vmem:[%s1 + $0x598] sm:$0xff]
        %v617 = vld [vmem:[%s1 + $0x5a8] sm:$0xff]
        %v618 = vld [vmem:[%s1 + $0x5b8] sm:$0xff]
        %v619 = vld [vmem:[%s1 + $0x5c8] sm:$0xff]
        %v620 = vld [vmem:[%s1 + $0x5d8] sm:$0xff]
        %v621 = vld [vmem:[%s1 + $0x5e8] sm:$0xff]
        %v622 = vld [vmem:[%s1 + $0x5f8] sm:$0xff]
        %v623 = vld [vmem:[%s1 + $0x608] sm:$0xff]
        %v624 = vld [vmem:[%s1 + $0x618] sm:$0xff]
        %v625 = vld [vmem:[%s1 + $0x628] sm:$0xff]
        %v626 = vld [vmem:[%s1 + $0x638] sm:$0xff]
        %v627 = vld [vmem:[%s1 + $0x648] sm:$0xff]
        %v628 = vld [vmem:[%s1 + $0x658] sm:$0xff]
        %v629 = vld [vmem:[%s1 + $0x668] sm:$0xff]
        %v630 = vld [vmem:[%s1 + $0x678] sm:$0xff]
        %v631 = vld [vmem:[%s1 + $0x688] sm:$0xff]
        %v632 = vld [vmem:[%s1 + $0x698] sm:$0xff]
        %v633 = vld [vmem:[%s1 + $0x6a8] sm:$0xff]
        %v634 = vld [vmem:[%s1 + $0x6b8] sm:$0xff]
        %v635 = vld [vmem:[%s1 + $0x6c8] sm:$0xff]
        %v636 = vld [vmem:[%s1 + $0x6d8] sm:$0xff]
        %v637 = vld [vmem:[%s1 + $0x6e8] sm:$0xff]
        %v638 = vld [vmem:[%s1 + $0x6f8] sm:$0xff]
        %v639 = vld [vmem:[%s1 + $0x708] sm:$0xff]
        %v640 = vld [vmem:[%s1 + $0x718] sm:$0xff]
        %v641 = vld [vmem:[%s1 + $0x728] sm:$0xff]
        %v642 = vld [vmem:[%s1 + $0x738] sm:$0xff]
        %v643 = vld [vmem:[%s1 + $0x748] sm:$0xff]
        %v644 = vld [vmem:[%s1 + $0x758] sm:$0xff]
        %v645 = vld [vmem:[%s1 + $0x768] sm:$0xff]
        %v646 = vld [vmem:[%s1 + $0x778] sm:$0xff]
        %v647 = vld [vmem:[%s1 + $0x788] sm:$0xff]
        %v648 = vld [vmem:[%s1 + $0x798] sm:$0xff]
        %v649 = vld [vmem:[%s1 + $0x7a8] sm:$0xff]
        %v650 = vld [vmem:[%s1 + $0x7b8] sm:$0xff]
        %v651 = vld [vmem:[%s1 + $0x7c8] sm:$0xff]
        %v652 = vld [vmem:[%s1 + $0x7d8] sm:$0xff]
        %v653 = vld [vmem:[%s1 + $0x7e8] sm:$0xff]
        %v654 = vld [vmem:[%s1 + $0x7f8] sm:$0xff]
        %v655 = vld [vmem:[%s1 + $0x800] ss:$0 sm:$0xff]
        %v656 = vld [vmem:[%s1 + $0x808] ss:$0 sm:$0xff]
        %v657 = vld [vmem:[%s375] sm:$0xf]
        %v658 = vld [vmem:[%s375 + $0x4] sm:$0xf]
        %v659 = vld [vmem:[%s375 + $0x8] sm:$0xf]
        %v660 = vld [vmem:[%s375 + $0xc] sm:$0xf]
        %v661 = vld [vmem:[%s375 + $0x10] sm:$0xf]
        %v662 = vld [vmem:[%s375 + $0x14] sm:$0xf]
        %v663 = vld [vmem:[%s375 + $0x18] sm:$0xf]
        %v664 = vld [vmem:[%s375 + $0x1c] sm:$0xf]
        %v665 = vld [vmem:[%s375 + $0x20] sm:$0xf]
        %v666 = vld [vmem:[%s375 + $0x24] sm:$0xf]
        %v667 = vld [vmem:[%s375 + $0x28] sm:$0xf]
        %v668 = vld [vmem:[%s375 + $0x2c] sm:$0xf]
        %v669 = vld [vmem:[%s375 + $0x30] sm:$0xf]
        %v670 = vld [vmem:[%s375 + $0x34] sm:$0xf]
        %v671 = vld [vmem:[%s375 + $0x38] sm:$0xf]
        %v672 = vld [vmem:[%s375 + $0x3c] sm:$0xf]
        %v673 = vld [vmem:[%s375 + $0x40] sm:$0xf]
        %v674 = vld [vmem:[%s375 + $0x44] sm:$0xf]
        %v675 = vld [vmem:[%s375 + $0x48] sm:$0xf]
        %v676 = vld [vmem:[%s375 + $0x4c] sm:$0xf]
        %v677 = vld [vmem:[%s375 + $0x50] sm:$0xf]
        %v678 = vld [vmem:[%s375 + $0x54] sm:$0xf]
        %v679 = vld [vmem:[%s375 + $0x58] sm:$0xf]
        %v680 = vld [vmem:[%s375 + $0x5c] sm:$0xf]
        %v681 = vld [vmem:[%s375 + $0x60] sm:$0xf]
        %v682 = vld [vmem:[%s375 + $0x64] sm:$0xf]
        %v683 = vld [vmem:[%s375 + $0x68] sm:$0xf]
        %v684 = vld [vmem:[%s375 + $0x6c] sm:$0xf]
        %v685 = vld [vmem:[%s375 + $0x70] sm:$0xf]
        %v686 = vld [vmem:[%s375 + $0x74] sm:$0xf]
        %v687 = vld [vmem:[%s375 + $0x78] sm:$0xf]
        %v688 = vld [vmem:[%s375 + $0x7c] sm:$0xf]
        %v689 = vld [vmem:[%s375 + $0x80] sm:$0xf]
        %v690 = vld [vmem:[%s375 + $0x84] sm:$0xf]
        %v691 = vld [vmem:[%s375 + $0x88] sm:$0xf]
        %v692 = vld [vmem:[%s375 + $0x8c] sm:$0xf]
        %v693 = vld [vmem:[%s375 + $0x90] sm:$0xf]
        %v694 = vld [vmem:[%s375 + $0x94] sm:$0xf]
        %v695 = vld [vmem:[%s375 + $0x98] sm:$0xf]
        %v696 = vld [vmem:[%s375 + $0x9c] sm:$0xf]
        %v697 = vld [vmem:[%s375 + $0xa0] sm:$0xf]
        %v698 = vld [vmem:[%s375 + $0xa4] sm:$0xf]
        %v699 = vld [vmem:[%s375 + $0xa8] sm:$0xf]
        %v700 = vld [vmem:[%s375 + $0xac] sm:$0xf]
        %v701 = vld [vmem:[%s375 + $0xb0] sm:$0xf]
        %v702 = vld [vmem:[%s375 + $0xb4] sm:$0xf]
        %v703 = vld [vmem:[%s375 + $0xb8] sm:$0xf]
        %v704 = vld [vmem:[%s375 + $0xbc] sm:$0xf]
        %v705 = vld [vmem:[%s375 + $0xc0] sm:$0xf]
        %v706 = vld [vmem:[%s375 + $0xc4] sm:$0xf]
        %v707 = vld [vmem:[%s375 + $0xc8] sm:$0xf]
        %v708 = vld [vmem:[%s375 + $0xcc] sm:$0xf]
        %v709 = vld [vmem:[%s375 + $0xd0] sm:$0xf]
        %v710 = vld [vmem:[%s375 + $0xd4] sm:$0xf]
        %v711 = vld [vmem:[%s375 + $0xd8] sm:$0xf]
        %v712 = vld [vmem:[%s375 + $0xdc] sm:$0xf]
        %v713 = vld [vmem:[%s375 + $0xe0] sm:$0xf]
        %v714 = vld [vmem:[%s375 + $0xe4] sm:$0xf]
        %v715 = vld [vmem:[%s375 + $0xe8] sm:$0xf]
        %v716 = vld [vmem:[%s375 + $0xec] sm:$0xf]
        %v717 = vld [vmem:[%s375 + $0xf0] sm:$0xf]
        %v718 = vld [vmem:[%s375 + $0xf4] sm:$0xf]
        %v719 = vld [vmem:[%s375 + $0xf8] sm:$0xf]
        %v720 = vld [vmem:[%s375 + $0xfc] sm:$0xf]
        %v721 = vld [vmem:[%s375 + $0x100] sm:$0xf]
        %v722 = vld [vmem:[%s375 + $0x104] sm:$0xf]
        %v723 = vld [vmem:[%s375 + $0x108] sm:$0xf]
        %v724 = vld [vmem:[%s375 + $0x10c] sm:$0xf]
        %v725 = vld [vmem:[%s375 + $0x110] sm:$0xf]
        %v726 = vld [vmem:[%s375 + $0x114] sm:$0xf]
        %v727 = vld [vmem:[%s375 + $0x118] sm:$0xf]
        %v728 = vld [vmem:[%s375 + $0x11c] sm:$0xf]
        %v729 = vld [vmem:[%s375 + $0x120] sm:$0xf]
        %v730 = vld [vmem:[%s375 + $0x124] sm:$0xf]
        %v731 = vld [vmem:[%s375 + $0x128] sm:$0xf]
        %v732 = vld [vmem:[%s375 + $0x12c] sm:$0xf]
        %v733 = vld [vmem:[%s375 + $0x130] sm:$0xf]
        %v734 = vld [vmem:[%s375 + $0x134] sm:$0xf]
        %v735 = vld [vmem:[%s375 + $0x138] sm:$0xf]
        %v736 = vld [vmem:[%s375 + $0x13c] sm:$0xf]
        %v737 = vld [vmem:[%s375 + $0x140] sm:$0xf]
        %v738 = vld [vmem:[%s375 + $0x144] sm:$0xf]
        %v739 = vld [vmem:[%s375 + $0x148] sm:$0xf]
        %v740 = vld [vmem:[%s375 + $0x14c] sm:$0xf]
        %v741 = vld [vmem:[%s375 + $0x150] sm:$0xf]
        %v742 = vld [vmem:[%s375 + $0x154] sm:$0xf]
        %v743 = vld [vmem:[%s375 + $0x158] sm:$0xf]
        %v744 = vld [vmem:[%s375 + $0x15c] sm:$0xf]
        %v745 = vld [vmem:[%s375 + $0x160] sm:$0xf]
        %v746 = vld [vmem:[%s375 + $0x164] sm:$0xf]
        %v747 = vld [vmem:[%s375 + $0x168] sm:$0xf]
        %v748 = vld [vmem:[%s375 + $0x16c] sm:$0xf]
        %v749 = vld [vmem:[%s375 + $0x170] sm:$0xf]
        %v750 = vld [vmem:[%s375 + $0x174] sm:$0xf]
        %v751 = vld [vmem:[%s375 + $0x178] sm:$0xf]
        %v752 = vld [vmem:[%s375 + $0x17c] sm:$0xf]
        %v753 = vld [vmem:[%s375 + $0x180] sm:$0xf]
        %v754 = vld [vmem:[%s375 + $0x184] sm:$0xf]
        %v755 = vld [vmem:[%s375 + $0x188] sm:$0xf]
        %v756 = vld [vmem:[%s375 + $0x18c] sm:$0xf]
        %v757 = vld [vmem:[%s375 + $0x190] sm:$0xf]
        %v758 = vld [vmem:[%s375 + $0x194] sm:$0xf]
        %v759 = vld [vmem:[%s375 + $0x198] sm:$0xf]
        %v760 = vld [vmem:[%s375 + $0x19c] sm:$0xf]
        %v761 = vld [vmem:[%s375 + $0x1a0] sm:$0xf]
        %v762 = vld [vmem:[%s375 + $0x1a4] sm:$0xf]
        %v763 = vld [vmem:[%s375 + $0x1a8] sm:$0xf]
        %v764 = vld [vmem:[%s375 + $0x1ac] sm:$0xf]
        %v765 = vld [vmem:[%s375 + $0x1b0] sm:$0xf]
        %v766 = vld [vmem:[%s375 + $0x1b4] sm:$0xf]
        %v767 = vld [vmem:[%s375 + $0x1b8] sm:$0xf]
        %v768 = vld [vmem:[%s375 + $0x1bc] sm:$0xf]
        %v769 = vld [vmem:[%s375 + $0x1c0] sm:$0xf]
        %v770 = vld [vmem:[%s375 + $0x1c4] sm:$0xf]
        %v771 = vld [vmem:[%s375 + $0x1c8] sm:$0xf]
        %v772 = vld [vmem:[%s375 + $0x1cc] sm:$0xf]
        %v773 = vld [vmem:[%s375 + $0x1d0] sm:$0xf]
        %v774 = vld [vmem:[%s375 + $0x1d4] sm:$0xf]
        %v775 = vld [vmem:[%s375 + $0x1d8] sm:$0xf]
        %v776 = vld [vmem:[%s375 + $0x1dc] sm:$0xf]
        %v777 = vld [vmem:[%s375 + $0x1e0] sm:$0xf]
        %v778 = vld [vmem:[%s375 + $0x1e4] sm:$0xf]
        %v779 = vld [vmem:[%s375 + $0x1e8] sm:$0xf]
        %v780 = vld [vmem:[%s375 + $0x1ec] sm:$0xf]
        %v781 = vld [vmem:[%s375 + $0x1f0] sm:$0xf]
        %v782 = vld [vmem:[%s375 + $0x1f4] sm:$0xf]
        %v783 = vld [vmem:[%s375 + $0x1f8] sm:$0xf]
        %v784 = vld [vmem:[%s375 + $0x1fc] sm:$0xf]
        %v785 = vunpack.c.l.bf16 %v657
        %v786 = vunpack.c.l.bf16 %v658
        %v787 = vunpack.c.l.bf16 %v659
        %v788 = vunpack.c.l.bf16 %v660
        %v789 = vunpack.c.l.bf16 %v661
        %v790 = vunpack.c.l.bf16 %v662
        %v791 = vunpack.c.l.bf16 %v663
        %v792 = vunpack.c.l.bf16 %v664
        %v793 = vunpack.c.l.bf16 %v665
        %v794 = vunpack.c.l.bf16 %v666
        %v795 = vunpack.c.l.bf16 %v667
        %v796 = vunpack.c.l.bf16 %v668
        %v797 = vunpack.c.l.bf16 %v669
        %v798 = vunpack.c.l.bf16 %v670
        %v799 = vunpack.c.l.bf16 %v671
        %v800 = vunpack.c.l.bf16 %v672
        %v801 = vunpack.c.l.bf16 %v673
        %v802 = vunpack.c.l.bf16 %v674
        %v803 = vunpack.c.l.bf16 %v675
        %v804 = vunpack.c.l.bf16 %v676
        %v805 = vunpack.c.l.bf16 %v677
        %v806 = vunpack.c.l.bf16 %v678
        %v807 = vunpack.c.l.bf16 %v679
        %v808 = vunpack.c.l.bf16 %v680
        %v809 = vunpack.c.l.bf16 %v681
        %v810 = vunpack.c.l.bf16 %v682
        %v811 = vunpack.c.l.bf16 %v683
        %v812 = vunpack.c.l.bf16 %v684
        %v813 = vunpack.c.l.bf16 %v685
        %v814 = vunpack.c.l.bf16 %v686
        %v815 = vunpack.c.l.bf16 %v687
        %v816 = vunpack.c.l.bf16 %v688
        %v817 = vunpack.c.l.bf16 %v689
        %v818 = vunpack.c.l.bf16 %v690
        %v819 = vunpack.c.l.bf16 %v691
        %v820 = vunpack.c.l.bf16 %v692
        %v821 = vunpack.c.l.bf16 %v693
        %v822 = vunpack.c.l.bf16 %v694
        %v823 = vunpack.c.l.bf16 %v695
        %v824 = vunpack.c.l.bf16 %v696
        %v825 = vunpack.c.l.bf16 %v697
        %v826 = vunpack.c.l.bf16 %v698
        %v827 = vunpack.c.l.bf16 %v699
        %v828 = vunpack.c.l.bf16 %v700
        %v829 = vunpack.c.l.bf16 %v701
        %v830 = vunpack.c.l.bf16 %v702
        %v831 = vunpack.c.l.bf16 %v703
        %v832 = vunpack.c.l.bf16 %v704
        %v833 = vunpack.c.l.bf16 %v705
        %v834 = vunpack.c.l.bf16 %v706
        %v835 = vunpack.c.l.bf16 %v707
        %v836 = vunpack.c.l.bf16 %v708
        %v837 = vunpack.c.l.bf16 %v709
        %v838 = vunpack.c.l.bf16 %v710
        %v839 = vunpack.c.l.bf16 %v711
        %v840 = vunpack.c.l.bf16 %v712
        %v841 = vunpack.c.l.bf16 %v713
        %v842 = vunpack.c.l.bf16 %v714
        %v843 = vunpack.c.l.bf16 %v715
        %v844 = vunpack.c.l.bf16 %v716
        %v845 = vunpack.c.l.bf16 %v717
        %v846 = vunpack.c.l.bf16 %v718
        %v847 = vunpack.c.l.bf16 %v719
        %v848 = vunpack.c.l.bf16 %v720
        %v849 = vunpack.c.l.bf16 %v721
        %v850 = vunpack.c.l.bf16 %v722
        %v851 = vunpack.c.l.bf16 %v723
        %v852 = vunpack.c.l.bf16 %v724
        %v853 = vunpack.c.l.bf16 %v725
        %v854 = vunpack.c.l.bf16 %v726
        %v855 = vunpack.c.l.bf16 %v727
        %v856 = vunpack.c.l.bf16 %v728
        %v857 = vunpack.c.l.bf16 %v729
        %v858 = vunpack.c.l.bf16 %v730
        %v859 = vunpack.c.l.bf16 %v731
        %v860 = vunpack.c.l.bf16 %v732
        %v861 = vunpack.c.l.bf16 %v733
        %v862 = vunpack.c.l.bf16 %v734
        %v863 = vunpack.c.l.bf16 %v735
        %v864 = vunpack.c.l.bf16 %v736
        %v865 = vunpack.c.l.bf16 %v737
        %v866 = vunpack.c.l.bf16 %v738
        %v867 = vunpack.c.l.bf16 %v739
        %v868 = vunpack.c.l.bf16 %v740
        %v869 = vunpack.c.l.bf16 %v741
        %v870 = vunpack.c.l.bf16 %v742
        %v871 = vunpack.c.l.bf16 %v743
        %v872 = vunpack.c.l.bf16 %v744
        %v873 = vunpack.c.l.bf16 %v745
        %v874 = vunpack.c.l.bf16 %v746
        %v875 = vunpack.c.l.bf16 %v747
        %v876 = vunpack.c.l.bf16 %v748
        %v877 = vunpack.c.l.bf16 %v749
        %v878 = vunpack.c.l.bf16 %v750
        %v879 = vunpack.c.l.bf16 %v751
        %v880 = vunpack.c.l.bf16 %v752
        %v881 = vunpack.c.l.bf16 %v753
        %v882 = vunpack.c.l.bf16 %v754
        %v883 = vunpack.c.l.bf16 %v755
        %v884 = vunpack.c.l.bf16 %v756
        %v885 = vunpack.c.l.bf16 %v757
        %v886 = vunpack.c.l.bf16 %v758
        %v887 = vunpack.c.l.bf16 %v759
        %v888 = vunpack.c.l.bf16 %v760
        %v889 = vunpack.c.l.bf16 %v761
        %v890 = vunpack.c.l.bf16 %v762
        %v891 = vunpack.c.l.bf16 %v763
        %v892 = vunpack.c.l.bf16 %v764
        %v893 = vunpack.c.l.bf16 %v765
        %v894 = vunpack.c.l.bf16 %v766
        %v895 = vunpack.c.l.bf16 %v767
        %v896 = vunpack.c.l.bf16 %v768
        %v897 = vunpack.c.l.bf16 %v769
        %v898 = vunpack.c.l.bf16 %v770
        %v899 = vunpack.c.l.bf16 %v771
        %v900 = vunpack.c.l.bf16 %v772
        %v901 = vunpack.c.l.bf16 %v773
        %v902 = vunpack.c.l.bf16 %v774
        %v903 = vunpack.c.l.bf16 %v775
        %v904 = vunpack.c.l.bf16 %v776
        %v905 = vunpack.c.l.bf16 %v777
        %v906 = vunpack.c.l.bf16 %v778
        %v907 = vunpack.c.l.bf16 %v779
        %v908 = vunpack.c.l.bf16 %v780
        %v909 = vunpack.c.l.bf16 %v781
        %v910 = vunpack.c.l.bf16 %v782
        %v911 = vunpack.c.l.bf16 %v783
        %v912 = vunpack.c.l.bf16 %v784
        %v913 = vld [vmem:[%s375 + $0x200] sm:$0x1]
        %v914 = vunpack.c.l.bf16 %v913
        %v915 = vmul.f32 %v527, %v785
        %v916 = vmul.f32 %v528, %v786
        %v917 = vmul.f32 %v529, %v787
        %v918 = vmul.f32 %v530, %v788
        %v919 = vmul.f32 %v531, %v789
        %v920 = vmul.f32 %v532, %v790
        %v921 = vmul.f32 %v533, %v791
        %v922 = vmul.f32 %v534, %v792
        %v923 = vmul.f32 %v535, %v793
        %v924 = vmul.f32 %v536, %v794
        %v925 = vmul.f32 %v537, %v795
        %v926 = vmul.f32 %v538, %v796
        %v927 = vmul.f32 %v539, %v797
        %v928 = vmul.f32 %v540, %v798
        %v929 = vmul.f32 %v541, %v799
        %v930 = vmul.f32 %v542, %v800
        %v931 = vmul.f32 %v543, %v801
        %v932 = vmul.f32 %v544, %v802
        %v933 = vmul.f32 %v545, %v803
        %v934 = vmul.f32 %v546, %v804
        %v935 = vmul.f32 %v547, %v805
        %v936 = vmul.f32 %v548, %v806
        %v937 = vmul.f32 %v549, %v807
        %v938 = vmul.f32 %v550, %v808
        %v939 = vmul.f32 %v551, %v809
        %v940 = vmul.f32 %v552, %v810
        %v941 = vmul.f32 %v553, %v811
        %v942 = vmul.f32 %v554, %v812
        %v943 = vmul.f32 %v555, %v813
        %v944 = vmul.f32 %v556, %v814
        %v945 = vmul.f32 %v557, %v815
        %v946 = vmul.f32 %v558, %v816
        %v947 = vmul.f32 %v559, %v817
        %v948 = vmul.f32 %v560, %v818
        %v949 = vmul.f32 %v561, %v819
        %v950 = vmul.f32 %v562, %v820
        %v951 = vmul.f32 %v563, %v821
        %v952 = vmul.f32 %v564, %v822
        %v953 = vmul.f32 %v565, %v823
        %v954 = vmul.f32 %v566, %v824
        %v955 = vmul.f32 %v567, %v825
        %v956 = vmul.f32 %v568, %v826
        %v957 = vmul.f32 %v569, %v827
        %v958 = vmul.f32 %v570, %v828
        %v959 = vmul.f32 %v571, %v829
        %v960 = vmul.f32 %v572, %v830
        %v961 = vmul.f32 %v573, %v831
        %v962 = vmul.f32 %v574, %v832
        %v963 = vmul.f32 %v575, %v833
        %v964 = vmul.f32 %v576, %v834
        %v965 = vmul.f32 %v577, %v835
        %v966 = vmul.f32 %v578, %v836
        %v967 = vmul.f32 %v579, %v837
        %v968 = vmul.f32 %v580, %v838
        %v969 = vmul.f32 %v581, %v839
        %v970 = vmul.f32 %v582, %v840
        %v971 = vmul.f32 %v583, %v841
        %v972 = vmul.f32 %v584, %v842
        %v973 = vmul.f32 %v585, %v843
        %v974 = vmul.f32 %v586, %v844
        %v975 = vmul.f32 %v587, %v845
        %v976 = vmul.f32 %v588, %v846
        %v977 = vmul.f32 %v589, %v847
        %v978 = vmul.f32 %v590, %v848
        %v979 = vmul.f32 %v591, %v849
        %v980 = vmul.f32 %v592, %v850
        %v981 = vmul.f32 %v593, %v851
        %v982 = vmul.f32 %v594, %v852
        %v983 = vmul.f32 %v595, %v853
        %v984 = vmul.f32 %v596, %v854
        %v985 = vmul.f32 %v597, %v855
        %v986 = vmul.f32 %v598, %v856
        %v987 = vmul.f32 %v599, %v857
        %v988 = vmul.f32 %v600, %v858
        %v989 = vmul.f32 %v601, %v859
        %v990 = vmul.f32 %v602, %v860
        %v991 = vmul.f32 %v603, %v861
        %v992 = vmul.f32 %v604, %v862
        %v993 = vmul.f32 %v605, %v863
        %v994 = vmul.f32 %v606, %v864
        %v995 = vmul.f32 %v607, %v865
        %v996 = vmul.f32 %v608, %v866
        %v997 = vmul.f32 %v609, %v867
        %v998 = vmul.f32 %v610, %v868
        %v999 = vmul.f32 %v611, %v869
        %v1000 = vmul.f32 %v612, %v870
        %v1001 = vmul.f32 %v613, %v871
        %v1002 = vmul.f32 %v614, %v872
        %v1003 = vmul.f32 %v615, %v873
        %v1004 = vmul.f32 %v616, %v874
        %v1005 = vmul.f32 %v617, %v875
        %v1006 = vmul.f32 %v618, %v876
        %v1007 = vmul.f32 %v619, %v877
        %v1008 = vmul.f32 %v620, %v878
        %v1009 = vmul.f32 %v621, %v879
        %v1010 = vmul.f32 %v622, %v880
        %v1011 = vmul.f32 %v623, %v881
        %v1012 = vmul.f32 %v624, %v882
        %v1013 = vmul.f32 %v625, %v883
        %v1014 = vmul.f32 %v626, %v884
        %v1015 = vmul.f32 %v627, %v885
        %v1016 = vmul.f32 %v628, %v886
        %v1017 = vmul.f32 %v629, %v887
        %v1018 = vmul.f32 %v630, %v888
        %v1019 = vmul.f32 %v631, %v889
        %v1020 = vmul.f32 %v632, %v890
        %v1021 = vmul.f32 %v633, %v891
        %v1022 = vmul.f32 %v634, %v892
        %v1023 = vmul.f32 %v635, %v893
        %v1024 = vmul.f32 %v636, %v894
        %v1025 = vmul.f32 %v637, %v895
        %v1026 = vmul.f32 %v638, %v896
        %v1027 = vmul.f32 %v639, %v897
        %v1028 = vmul.f32 %v640, %v898
        %v1029 = vmul.f32 %v641, %v899
        %v1030 = vmul.f32 %v642, %v900
        %v1031 = vmul.f32 %v643, %v901
        %v1032 = vmul.f32 %v644, %v902
        %v1033 = vmul.f32 %v645, %v903
        %v1034 = vmul.f32 %v646, %v904
        %v1035 = vmul.f32 %v647, %v905
        %v1036 = vmul.f32 %v648, %v906
        %v1037 = vmul.f32 %v649, %v907
        %v1038 = vmul.f32 %v650, %v908
        %v1039 = vmul.f32 %v651, %v909
        %v1040 = vmul.f32 %v652, %v910
        %v1041 = vmul.f32 %v653, %v911
        %v1042 = vmul.f32 %v654, %v912
        %v1043 = vadd.f32 %v399, %v915
        %v1044 = vadd.f32 %v400, %v916
        %v1045 = vadd.f32 %v401, %v917
        %v1046 = vadd.f32 %v402, %v918
        %v1047 = vadd.f32 %v403, %v919
        %v1048 = vadd.f32 %v404, %v920
        %v1049 = vadd.f32 %v405, %v921
        %v1050 = vadd.f32 %v406, %v922
        %v1051 = vadd.f32 %v407, %v923
        %v1052 = vadd.f32 %v408, %v924
        %v1053 = vadd.f32 %v409, %v925
        %v1054 = vadd.f32 %v410, %v926
        %v1055 = vadd.f32 %v411, %v927
        %v1056 = vadd.f32 %v412, %v928
        %v1057 = vadd.f32 %v413, %v929
        %v1058 = vadd.f32 %v414, %v930
        %v1059 = vadd.f32 %v415, %v931
        %v1060 = vadd.f32 %v416, %v932
        %v1061 = vadd.f32 %v417, %v933
        %v1062 = vadd.f32 %v418, %v934
        %v1063 = vadd.f32 %v419, %v935
        %v1064 = vadd.f32 %v420, %v936
        %v1065 = vadd.f32 %v421, %v937
        %v1066 = vadd.f32 %v422, %v938
        %v1067 = vadd.f32 %v423, %v939
        %v1068 = vadd.f32 %v424, %v940
        %v1069 = vadd.f32 %v425, %v941
        %v1070 = vadd.f32 %v426, %v942
        %v1071 = vadd.f32 %v427, %v943
        %v1072 = vadd.f32 %v428, %v944
        %v1073 = vadd.f32 %v429, %v945
        %v1074 = vadd.f32 %v430, %v946
        %v1075 = vadd.f32 %v431, %v947
        %v1076 = vadd.f32 %v432, %v948
        %v1077 = vadd.f32 %v433, %v949
        %v1078 = vadd.f32 %v434, %v950
        %v1079 = vadd.f32 %v435, %v951
        %v1080 = vadd.f32 %v436, %v952
        %v1081 = vadd.f32 %v437, %v953
        %v1082 = vadd.f32 %v438, %v954
        %v1083 = vadd.f32 %v439, %v955
        %v1084 = vadd.f32 %v440, %v956
        %v1085 = vadd.f32 %v441, %v957
        %v1086 = vadd.f32 %v442, %v958
        %v1087 = vadd.f32 %v443, %v959
        %v1088 = vadd.f32 %v444, %v960
        %v1089 = vadd.f32 %v445, %v961
        %v1090 = vadd.f32 %v446, %v962
        %v1091 = vadd.f32 %v447, %v963
        %v1092 = vadd.f32 %v448, %v964
        %v1093 = vadd.f32 %v449, %v965
        %v1094 = vadd.f32 %v450, %v966
        %v1095 = vadd.f32 %v451, %v967
        %v1096 = vadd.f32 %v452, %v968
        %v1097 = vadd.f32 %v453, %v969
        %v1098 = vadd.f32 %v454, %v970
        %v1099 = vadd.f32 %v455, %v971
        %v1100 = vadd.f32 %v456, %v972
        %v1101 = vadd.f32 %v457, %v973
        %v1102 = vadd.f32 %v458, %v974
        %v1103 = vadd.f32 %v459, %v975
        %v1104 = vadd.f32 %v460, %v976
        %v1105 = vadd.f32 %v461, %v977
        %v1106 = vadd.f32 %v462, %v978
        %v1107 = vadd.f32 %v463, %v979
        %v1108 = vadd.f32 %v464, %v980
        %v1109 = vadd.f32 %v465, %v981
        %v1110 = vadd.f32 %v466, %v982
        %v1111 = vadd.f32 %v467, %v983
        %v1112 = vadd.f32 %v468, %v984
        %v1113 = vadd.f32 %v469, %v985
        %v1114 = vadd.f32 %v470, %v986
        %v1115 = vadd.f32 %v471, %v987
        %v1116 = vadd.f32 %v472, %v988
        %v1117 = vadd.f32 %v473, %v989
        %v1118 = vadd.f32 %v474, %v990
        %v1119 = vadd.f32 %v475, %v991
        %v1120 = vadd.f32 %v476, %v992
        %v1121 = vadd.f32 %v477, %v993
        %v1122 = vadd.f32 %v478, %v994
        %v1123 = vadd.f32 %v479, %v995
        %v1124 = vadd.f32 %v480, %v996
        %v1125 = vadd.f32 %v481, %v997
        %v1126 = vadd.f32 %v482, %v998
        %v1127 = vadd.f32 %v483, %v999
        %v1128 = vadd.f32 %v484, %v1000
        %v1129 = vadd.f32 %v485, %v1001
        %v1130 = vadd.f32 %v486, %v1002
        %v1131 = vadd.f32 %v487, %v1003
        %v1132 = vadd.f32 %v488, %v1004
        %v1133 = vadd.f32 %v489, %v1005
        %v1134 = vadd.f32 %v490, %v1006
        %v1135 = vadd.f32 %v491, %v1007
        %v1136 = vadd.f32 %v492, %v1008
        %v1137 = vadd.f32 %v493, %v1009
        %v1138 = vadd.f32 %v494, %v1010
        %v1139 = vadd.f32 %v495, %v1011
        %v1140 = vadd.f32 %v496, %v1012
        %v1141 = vadd.f32 %v497, %v1013
        %v1142 = vadd.f32 %v498, %v1014
        %v1143 = vadd.f32 %v499, %v1015
        %v1144 = vadd.f32 %v500, %v1016
        %v1145 = vadd.f32 %v501, %v1017
        %v1146 = vadd.f32 %v502, %v1018
        %v1147 = vadd.f32 %v503, %v1019
        %v1148 = vadd.f32 %v504, %v1020
        %v1149 = vadd.f32 %v505, %v1021
        %v1150 = vadd.f32 %v506, %v1022
        %v1151 = vadd.f32 %v507, %v1023
        %v1152 = vadd.f32 %v508, %v1024
        %v1153 = vadd.f32 %v509, %v1025
        %v1154 = vadd.f32 %v510, %v1026
        %v1155 = vadd.f32 %v511, %v1027
        %v1156 = vadd.f32 %v512, %v1028
        %v1157 = vadd.f32 %v513, %v1029
        %v1158 = vadd.f32 %v514, %v1030
        %v1159 = vadd.f32 %v515, %v1031
        %v1160 = vadd.f32 %v516, %v1032
        %v1161 = vadd.f32 %v517, %v1033
        %v1162 = vadd.f32 %v518, %v1034
        %v1163 = vadd.f32 %v519, %v1035
        %v1164 = vadd.f32 %v520, %v1036
        %v1165 = vadd.f32 %v521, %v1037
        %v1166 = vadd.f32 %v522, %v1038
        %v1167 = vadd.f32 %v523, %v1039
        %v1168 = vadd.f32 %v524, %v1040
        %v1169 = vadd.f32 %v525, %v1041
        %v1170 = vadd.f32 %v526, %v1042
        %v1171 = vmul.f32 %v656, %v914
        %v1172 = vadd.f32 %v655, %v1171
        %v1173 = vpack.c.bf16 %v391, %v391
        %v1174 = vpack.c.bf16 %v392, %v392
        %v1175 = vpack.c.bf16 %v393, %v393
        %v1176 = vpack.c.bf16 %v394, %v394
        %v1177 = vpack.c.bf16 %v395, %v395
        %v1178 = vpack.c.bf16 %v396, %v396
        %v1179 = vpack.c.bf16 %v397, %v397
        %v1180 = vpack.c.bf16 %v398, %v398
        %v1181 = vpack.c.bf16 %v1044, %v1043
        %v1182 = vpack.c.bf16 %v1046, %v1045
        %v1183 = vpack.c.bf16 %v1048, %v1047
        %v1184 = vpack.c.bf16 %v1050, %v1049
        %v1185 = vpack.c.bf16 %v1052, %v1051
        %v1186 = vpack.c.bf16 %v1054, %v1053
        %v1187 = vpack.c.bf16 %v1056, %v1055
        %v1188 = vpack.c.bf16 %v1058, %v1057
        %v1189 = vpack.c.bf16 %v1060, %v1059
        %v1190 = vpack.c.bf16 %v1062, %v1061
        %v1191 = vpack.c.bf16 %v1064, %v1063
        %v1192 = vpack.c.bf16 %v1066, %v1065
        %v1193 = vpack.c.bf16 %v1068, %v1067
        %v1194 = vpack.c.bf16 %v1070, %v1069
        %v1195 = vpack.c.bf16 %v1072, %v1071
        %v1196 = vpack.c.bf16 %v1074, %v1073
        %v1197 = vpack.c.bf16 %v1076, %v1075
        %v1198 = vpack.c.bf16 %v1078, %v1077
        %v1199 = vpack.c.bf16 %v1080, %v1079
        %v1200 = vpack.c.bf16 %v1082, %v1081
        %v1201 = vpack.c.bf16 %v1084, %v1083
        %v1202 = vpack.c.bf16 %v1086, %v1085
        %v1203 = vpack.c.bf16 %v1088, %v1087
        %v1204 = vpack.c.bf16 %v1090, %v1089
        %v1205 = vpack.c.bf16 %v1092, %v1091
        %v1206 = vpack.c.bf16 %v1094, %v1093
        %v1207 = vpack.c.bf16 %v1096, %v1095
        %v1208 = vpack.c.bf16 %v1098, %v1097
        %v1209 = vpack.c.bf16 %v1100, %v1099
        %v1210 = vpack.c.bf16 %v1102, %v1101
        %v1211 = vpack.c.bf16 %v1104, %v1103
        %v1212 = vpack.c.bf16 %v1106, %v1105
        %v1213 = vpack.c.bf16 %v1108, %v1107
        %v1214 = vpack.c.bf16 %v1110, %v1109
        %v1215 = vpack.c.bf16 %v1112, %v1111
        %v1216 = vpack.c.bf16 %v1114, %v1113
        %v1217 = vpack.c.bf16 %v1116, %v1115
        %v1218 = vpack.c.bf16 %v1118, %v1117
        %v1219 = vpack.c.bf16 %v1120, %v1119
        %v1220 = vpack.c.bf16 %v1122, %v1121
        %v1221 = vpack.c.bf16 %v1124, %v1123
        %v1222 = vpack.c.bf16 %v1126, %v1125
        %v1223 = vpack.c.bf16 %v1128, %v1127
        %v1224 = vpack.c.bf16 %v1130, %v1129
        %v1225 = vpack.c.bf16 %v1132, %v1131
        %v1226 = vpack.c.bf16 %v1134, %v1133
        %v1227 = vpack.c.bf16 %v1136, %v1135
        %v1228 = vpack.c.bf16 %v1138, %v1137
        %v1229 = vpack.c.bf16 %v1140, %v1139
        %v1230 = vpack.c.bf16 %v1142, %v1141
        %v1231 = vpack.c.bf16 %v1144, %v1143
        %v1232 = vpack.c.bf16 %v1146, %v1145
        %v1233 = vpack.c.bf16 %v1148, %v1147
        %v1234 = vpack.c.bf16 %v1150, %v1149
        %v1235 = vpack.c.bf16 %v1152, %v1151
        %v1236 = vpack.c.bf16 %v1154, %v1153
        %v1237 = vpack.c.bf16 %v1156, %v1155
        %v1238 = vpack.c.bf16 %v1158, %v1157
        %v1239 = vpack.c.bf16 %v1160, %v1159
        %v1240 = vpack.c.bf16 %v1162, %v1161
        %v1241 = vpack.c.bf16 %v1164, %v1163
        %v1242 = vpack.c.bf16 %v1166, %v1165
        %v1243 = vpack.c.bf16 %v1168, %v1167
        %v1244 = vpack.c.bf16 %v1170, %v1169
        %v1245 = vperm.slane %v1172, 0
        %1246 = vmatpush.bf16.msra.mxu0 %v1188
        %1247 = vmatpush.bf16.msra.mxu0 %v1187
        %1248 = vmatpush.bf16.msra.mxu0 %v1186
        %1249 = vmatpush.bf16.msra.mxu0 %v1185
        %1250 = vmatpush.bf16.msra.mxu0 %v1184
        %1251 = vmatpush.bf16.msra.mxu0 %v1183
        %1252 = vmatpush.bf16.msra.mxu0 %v1182
        %1253 = vmatpush.bf16.msra.mxu0 %v1181
        %1254 = vmatmul.bf16.gmra.mxu0 %v1173
        %v1255 = vpop.f32.mrf.mxu0
        %v1256 = vadd.f32 %v1245, %v1255
        %v1257 = vpop.f32.mrf.mxu0
        %1258 = vdwg.mxu0
        %1259 = vmatpush.bf16.msra.mxu0 %v1196
        %1260 = vmatpush.bf16.msra.mxu0 %v1195
        %1261 = vmatpush.bf16.msra.mxu0 %v1194
        %1262 = vmatpush.bf16.msra.mxu0 %v1193
        %1263 = vmatpush.bf16.msra.mxu0 %v1192
        %1264 = vmatpush.bf16.msra.mxu0 %v1191
        %1265 = vmatpush.bf16.msra.mxu0 %v1190
        %1266 = vmatpush.bf16.msra.mxu0 %v1189
        %1267 = vmatmul.bf16.gmra.mxu0 %v1174
        %v1268 = vpop.f32.mrf.mxu0
        %v1269 = vadd.f32 %v1256, %v1268
        %v1270 = vpop.f32.mrf.mxu0
        %1271 = vdwg.mxu0
        %1272 = vmatpush.bf16.msra.mxu0 %v1204
        %1273 = vmatpush.bf16.msra.mxu0 %v1203
        %1274 = vmatpush.bf16.msra.mxu0 %v1202
        %1275 = vmatpush.bf16.msra.mxu0 %v1201
        %1276 = vmatpush.bf16.msra.mxu0 %v1200
        %1277 = vmatpush.bf16.msra.mxu0 %v1199
        %1278 = vmatpush.bf16.msra.mxu0 %v1198
        %1279 = vmatpush.bf16.msra.mxu0 %v1197
        %1280 = vmatmul.bf16.gmra.mxu0 %v1175
        %v1281 = vpop.f32.mrf.mxu0
        %v1282 = vadd.f32 %v1269, %v1281
        %v1283 = vpop.f32.mrf.mxu0
        %1284 = vdwg.mxu0
        %1285 = vmatpush.bf16.msra.mxu0 %v1212
        %1286 = vmatpush.bf16.msra.mxu0 %v1211
        %1287 = vmatpush.bf16.msra.mxu0 %v1210
        %1288 = vmatpush.bf16.msra.mxu0 %v1209
        %1289 = vmatpush.bf16.msra.mxu0 %v1208
        %1290 = vmatpush.bf16.msra.mxu0 %v1207
        %1291 = vmatpush.bf16.msra.mxu0 %v1206
        %1292 = vmatpush.bf16.msra.mxu0 %v1205
        %1293 = vmatmul.bf16.gmra.mxu0 %v1176
        %v1294 = vpop.f32.mrf.mxu0
        %v1295 = vadd.f32 %v1282, %v1294
        %v1296 = vpop.f32.mrf.mxu0
        %1297 = vdwg.mxu0
        %1298 = vmatpush.bf16.msra.mxu0 %v1220
        %1299 = vmatpush.bf16.msra.mxu0 %v1219
        %1300 = vmatpush.bf16.msra.mxu0 %v1218
        %1301 = vmatpush.bf16.msra.mxu0 %v1217
        %1302 = vmatpush.bf16.msra.mxu0 %v1216
        %1303 = vmatpush.bf16.msra.mxu0 %v1215
        %1304 = vmatpush.bf16.msra.mxu0 %v1214
        %1305 = vmatpush.bf16.msra.mxu0 %v1213
        %1306 = vmatmul.bf16.gmra.mxu0 %v1177
        %v1307 = vpop.f32.mrf.mxu0
        %v1308 = vadd.f32 %v1295, %v1307
        %v1309 = vpop.f32.mrf.mxu0
        %1310 = vdwg.mxu0
        %1311 = vmatpush.bf16.msra.mxu0 %v1228
        %1312 = vmatpush.bf16.msra.mxu0 %v1227
        %1313 = vmatpush.bf16.msra.mxu0 %v1226
        %1314 = vmatpush.bf16.msra.mxu0 %v1225
        %1315 = vmatpush.bf16.msra.mxu0 %v1224
        %1316 = vmatpush.bf16.msra.mxu0 %v1223
        %1317 = vmatpush.bf16.msra.mxu0 %v1222
        %1318 = vmatpush.bf16.msra.mxu0 %v1221
        %1319 = vmatmul.bf16.gmra.mxu0 %v1178
        %v1320 = vpop.f32.mrf.mxu0
        %v1321 = vadd.f32 %v1308, %v1320
        %v1322 = vpop.f32.mrf.mxu0
        %1323 = vdwg.mxu0
        %1324 = vmatpush.bf16.msra.mxu0 %v1236
        %1325 = vmatpush.bf16.msra.mxu0 %v1235
        %1326 = vmatpush.bf16.msra.mxu0 %v1234
        %1327 = vmatpush.bf16.msra.mxu0 %v1233
        %1328 = vmatpush.bf16.msra.mxu0 %v1232
        %1329 = vmatpush.bf16.msra.mxu0 %v1231
        %1330 = vmatpush.bf16.msra.mxu0 %v1230
        %1331 = vmatpush.bf16.msra.mxu0 %v1229
        %1332 = vmatmul.bf16.gmra.mxu0 %v1179
        %v1333 = vpop.f32.mrf.mxu0
        %v1334 = vadd.f32 %v1321, %v1333
        %v1335 = vpop.f32.mrf.mxu0
        %1336 = vdwg.mxu0
        %1337 = vmatpush.bf16.msra.mxu0 %v1244
        %1338 = vmatpush.bf16.msra.mxu0 %v1243
        %1339 = vmatpush.bf16.msra.mxu0 %v1242
        %1340 = vmatpush.bf16.msra.mxu0 %v1241
        %1341 = vmatpush.bf16.msra.mxu0 %v1240
        %1342 = vmatpush.bf16.msra.mxu0 %v1239
        %1343 = vmatpush.bf16.msra.mxu0 %v1238
        %1344 = vmatpush.bf16.msra.mxu0 %v1237
        %1345 = vmatmul.bf16.gmra.mxu0 %v1180
        %v1346 = vpop.f32.mrf.mxu0
        %v1347 = vadd.f32 %v1334, %v1346
        %v1348 = vpop.f32.mrf.mxu0
        %1349 = vdwg.mxu0
        %v1350 = vmax.f32 %v1347, 0.0
        %v1351 = vld [vmem:[%s3] sm:$0xff]
        %v1352 = vld [vmem:[%s3 + $0x10] sm:$0xff]
        %v1353 = vld [vmem:[%s3 + $0x20] sm:$0xff]
        %v1354 = vld [vmem:[%s3 + $0x30] sm:$0xff]
        %v1355 = vld [vmem:[%s3 + $0x40] sm:$0xff]
        %v1356 = vld [vmem:[%s3 + $0x50] sm:$0xff]
        %v1357 = vld [vmem:[%s3 + $0x60] sm:$0xff]
        %v1358 = vld [vmem:[%s3 + $0x70] sm:$0xff]
        %v1359 = vld [vmem:[%s3 + $0x80] sm:$0xff]
        %v1360 = vld [vmem:[%s3 + $0x90] sm:$0xff]
        %v1361 = vld [vmem:[%s3 + $0xa0] sm:$0xff]
        %v1362 = vld [vmem:[%s3 + $0xb0] sm:$0xff]
        %v1363 = vld [vmem:[%s3 + $0xc0] sm:$0xff]
        %v1364 = vld [vmem:[%s3 + $0xd0] sm:$0xff]
        %v1365 = vld [vmem:[%s3 + $0xe0] sm:$0xff]
        %v1366 = vld [vmem:[%s3 + $0xf0] sm:$0xff]
        %v1367 = vld [vmem:[%s3 + $0x8] sm:$0xff]
        %v1368 = vld [vmem:[%s3 + $0x18] sm:$0xff]
        %v1369 = vld [vmem:[%s3 + $0x28] sm:$0xff]
        %v1370 = vld [vmem:[%s3 + $0x38] sm:$0xff]
        %v1371 = vld [vmem:[%s3 + $0x48] sm:$0xff]
        %v1372 = vld [vmem:[%s3 + $0x58] sm:$0xff]
        %v1373 = vld [vmem:[%s3 + $0x68] sm:$0xff]
        %v1374 = vld [vmem:[%s3 + $0x78] sm:$0xff]
        %v1375 = vld [vmem:[%s3 + $0x88] sm:$0xff]
        %v1376 = vld [vmem:[%s3 + $0x98] sm:$0xff]
        %v1377 = vld [vmem:[%s3 + $0xa8] sm:$0xff]
        %v1378 = vld [vmem:[%s3 + $0xb8] sm:$0xff]
        %v1379 = vld [vmem:[%s3 + $0xc8] sm:$0xff]
        %v1380 = vld [vmem:[%s3 + $0xd8] sm:$0xff]
        %v1381 = vld [vmem:[%s3 + $0xe8] sm:$0xff]
        %v1382 = vld [vmem:[%s3 + $0xf8] sm:$0xff]
        %v1383 = vld [vmem:[%s3 + $0x100] ss:$0 sm:$0xff]
        %v1384 = vld [vmem:[%s3 + $0x108] ss:$0 sm:$0xff]
        %v1385 = vld [vmem:[%s380] sm:$0xf]
        %v1386 = vld [vmem:[%s380 + $0x4] sm:$0xf]
        %v1387 = vld [vmem:[%s380 + $0x8] sm:$0xf]
        %v1388 = vld [vmem:[%s380 + $0xc] sm:$0xf]
        %v1389 = vld [vmem:[%s380 + $0x10] sm:$0xf]
        %v1390 = vld [vmem:[%s380 + $0x14] sm:$0xf]
        %v1391 = vld [vmem:[%s380 + $0x18] sm:$0xf]
        %v1392 = vld [vmem:[%s380 + $0x1c] sm:$0xf]
        %v1393 = vld [vmem:[%s380 + $0x20] sm:$0xf]
        %v1394 = vld [vmem:[%s380 + $0x24] sm:$0xf]
        %v1395 = vld [vmem:[%s380 + $0x28] sm:$0xf]
        %v1396 = vld [vmem:[%s380 + $0x2c] sm:$0xf]
        %v1397 = vld [vmem:[%s380 + $0x30] sm:$0xf]
        %v1398 = vld [vmem:[%s380 + $0x34] sm:$0xf]
        %v1399 = vld [vmem:[%s380 + $0x38] sm:$0xf]
        %v1400 = vld [vmem:[%s380 + $0x3c] sm:$0xf]
        %v1401 = vunpack.c.l.bf16 %v1385
        %v1402 = vunpack.c.l.bf16 %v1386
        %v1403 = vunpack.c.l.bf16 %v1387
        %v1404 = vunpack.c.l.bf16 %v1388
        %v1405 = vunpack.c.l.bf16 %v1389
        %v1406 = vunpack.c.l.bf16 %v1390
        %v1407 = vunpack.c.l.bf16 %v1391
        %v1408 = vunpack.c.l.bf16 %v1392
        %v1409 = vunpack.c.l.bf16 %v1393
        %v1410 = vunpack.c.l.bf16 %v1394
        %v1411 = vunpack.c.l.bf16 %v1395
        %v1412 = vunpack.c.l.bf16 %v1396
        %v1413 = vunpack.c.l.bf16 %v1397
        %v1414 = vunpack.c.l.bf16 %v1398
        %v1415 = vunpack.c.l.bf16 %v1399
        %v1416 = vunpack.c.l.bf16 %v1400
        %v1417 = vld [vmem:[%s380 + $0x40] sm:$0x1]
        %v1418 = vunpack.c.l.bf16 %v1417
        %v1419 = vmul.f32 %v1367, %v1401
        %v1420 = vmul.f32 %v1368, %v1402
        %v1421 = vmul.f32 %v1369, %v1403
        %v1422 = vmul.f32 %v1370, %v1404
        %v1423 = vmul.f32 %v1371, %v1405
        %v1424 = vmul.f32 %v1372, %v1406
        %v1425 = vmul.f32 %v1373, %v1407
        %v1426 = vmul.f32 %v1374, %v1408
        %v1427 = vmul.f32 %v1375, %v1409
        %v1428 = vmul.f32 %v1376, %v1410
        %v1429 = vmul.f32 %v1377, %v1411
        %v1430 = vmul.f32 %v1378, %v1412
        %v1431 = vmul.f32 %v1379, %v1413
        %v1432 = vmul.f32 %v1380, %v1414
        %v1433 = vmul.f32 %v1381, %v1415
        %v1434 = vmul.f32 %v1382, %v1416
        %v1435 = vadd.f32 %v1351, %v1419
        %v1436 = vadd.f32 %v1352, %v1420
        %v1437 = vadd.f32 %v1353, %v1421
        %v1438 = vadd.f32 %v1354, %v1422
        %v1439 = vadd.f32 %v1355, %v1423
        %v1440 = vadd.f32 %v1356, %v1424
        %v1441 = vadd.f32 %v1357, %v1425
        %v1442 = vadd.f32 %v1358, %v1426
        %v1443 = vadd.f32 %v1359, %v1427
        %v1444 = vadd.f32 %v1360, %v1428
        %v1445 = vadd.f32 %v1361, %v1429
        %v1446 = vadd.f32 %v1362, %v1430
        %v1447 = vadd.f32 %v1363, %v1431
        %v1448 = vadd.f32 %v1364, %v1432
        %v1449 = vadd.f32 %v1365, %v1433
        %v1450 = vadd.f32 %v1366, %v1434
        %v1451 = vmul.f32 %v1384, %v1418
        %v1452 = vadd.f32 %v1383, %v1451
        %v1453 = vpack.c.bf16 %v1350, %v1350
        %v1454 = vpack.c.bf16 %v1436, %v1435
        %v1455 = vpack.c.bf16 %v1438, %v1437
        %v1456 = vpack.c.bf16 %v1440, %v1439
        %v1457 = vpack.c.bf16 %v1442, %v1441
        %v1458 = vpack.c.bf16 %v1444, %v1443
        %v1459 = vpack.c.bf16 %v1446, %v1445
        %v1460 = vpack.c.bf16 %v1448, %v1447
        %v1461 = vpack.c.bf16 %v1450, %v1449
        %v1462 = vperm.slane %v1452, 0
        %1463 = vmatpush.bf16.msra.mxu0 %v1461
        %1464 = vmatpush.bf16.msra.mxu0 %v1460
        %1465 = vmatpush.bf16.msra.mxu0 %v1459
        %1466 = vmatpush.bf16.msra.mxu0 %v1458
        %1467 = vmatpush.bf16.msra.mxu0 %v1457
        %1468 = vmatpush.bf16.msra.mxu0 %v1456
        %1469 = vmatpush.bf16.msra.mxu0 %v1455
        %1470 = vmatpush.bf16.msra.mxu0 %v1454
        %1471 = vmatmul.bf16.gmra.mxu0 %v1453
        %v1472 = vpop.f32.mrf.mxu0
        %v1473 = vadd.f32 %v1462, %v1472
        %v1474 = vpop.f32.mrf.mxu0
        %1475 = vdwg.mxu0
        %v1476 = vmax.f32 %v1473, 0.0
        %v1477 = vld [vmem:[%s5] sm:$0xff]
        %v1478 = vld [vmem:[%s5 + $0x10] sm:$0xff]
        %v1479 = vld [vmem:[%s5 + $0x20] sm:$0xff]
        %v1480 = vld [vmem:[%s5 + $0x30] sm:$0xff]
        %v1481 = vld [vmem:[%s5 + $0x40] sm:$0xff]
        %v1482 = vld [vmem:[%s5 + $0x50] sm:$0xff]
        %v1483 = vld [vmem:[%s5 + $0x60] sm:$0xff]
        %v1484 = vld [vmem:[%s5 + $0x70] sm:$0xff]
        %v1485 = vld [vmem:[%s5 + $0x80] sm:$0xff]
        %v1486 = vld [vmem:[%s5 + $0x90] sm:$0xff]
        %v1487 = vld [vmem:[%s5 + $0xa0] sm:$0xff]
        %v1488 = vld [vmem:[%s5 + $0xb0] sm:$0xff]
        %v1489 = vld [vmem:[%s5 + $0xc0] sm:$0xff]
        %v1490 = vld [vmem:[%s5 + $0xd0] sm:$0xff]
        %v1491 = vld [vmem:[%s5 + $0xe0] sm:$0xff]
        %v1492 = vld [vmem:[%s5 + $0xf0] sm:$0xff]
        %v1493 = vld [vmem:[%s5 + $0x8] sm:$0xff]
        %v1494 = vld [vmem:[%s5 + $0x18] sm:$0xff]
        %v1495 = vld [vmem:[%s5 + $0x28] sm:$0xff]
        %v1496 = vld [vmem:[%s5 + $0x38] sm:$0xff]
        %v1497 = vld [vmem:[%s5 + $0x48] sm:$0xff]
        %v1498 = vld [vmem:[%s5 + $0x58] sm:$0xff]
        %v1499 = vld [vmem:[%s5 + $0x68] sm:$0xff]
        %v1500 = vld [vmem:[%s5 + $0x78] sm:$0xff]
        %v1501 = vld [vmem:[%s5 + $0x88] sm:$0xff]
        %v1502 = vld [vmem:[%s5 + $0x98] sm:$0xff]
        %v1503 = vld [vmem:[%s5 + $0xa8] sm:$0xff]
        %v1504 = vld [vmem:[%s5 + $0xb8] sm:$0xff]
        %v1505 = vld [vmem:[%s5 + $0xc8] sm:$0xff]
        %v1506 = vld [vmem:[%s5 + $0xd8] sm:$0xff]
        %v1507 = vld [vmem:[%s5 + $0xe8] sm:$0xff]
        %v1508 = vld [vmem:[%s5 + $0xf8] sm:$0xff]
        %v1509 = vld [vmem:[%s5 + $0x100] ss:$0 sm:$0xff]
        %v1510 = vld [vmem:[%s5 + $0x108] ss:$0 sm:$0xff]
        %v1511 = vld [vmem:[%s385] sm:$0xf]
        %v1512 = vld [vmem:[%s385 + $0x4] sm:$0xf]
        %v1513 = vld [vmem:[%s385 + $0x8] sm:$0xf]
        %v1514 = vld [vmem:[%s385 + $0xc] sm:$0xf]
        %v1515 = vld [vmem:[%s385 + $0x10] sm:$0xf]
        %v1516 = vld [vmem:[%s385 + $0x14] sm:$0xf]
        %v1517 = vld [vmem:[%s385 + $0x18] sm:$0xf]
        %v1518 = vld [vmem:[%s385 + $0x1c] sm:$0xf]
        %v1519 = vld [vmem:[%s385 + $0x20] sm:$0xf]
        %v1520 = vld [vmem:[%s385 + $0x24] sm:$0xf]
        %v1521 = vld [vmem:[%s385 + $0x28] sm:$0xf]
        %v1522 = vld [vmem:[%s385 + $0x2c] sm:$0xf]
        %v1523 = vld [vmem:[%s385 + $0x30] sm:$0xf]
        %v1524 = vld [vmem:[%s385 + $0x34] sm:$0xf]
        %v1525 = vld [vmem:[%s385 + $0x38] sm:$0xf]
        %v1526 = vld [vmem:[%s385 + $0x3c] sm:$0xf]
        %v1527 = vunpack.c.l.bf16 %v1511
        %v1528 = vunpack.c.l.bf16 %v1512
        %v1529 = vunpack.c.l.bf16 %v1513
        %v1530 = vunpack.c.l.bf16 %v1514
        %v1531 = vunpack.c.l.bf16 %v1515
        %v1532 = vunpack.c.l.bf16 %v1516
        %v1533 = vunpack.c.l.bf16 %v1517
        %v1534 = vunpack.c.l.bf16 %v1518
        %v1535 = vunpack.c.l.bf16 %v1519
        %v1536 = vunpack.c.l.bf16 %v1520
        %v1537 = vunpack.c.l.bf16 %v1521
        %v1538 = vunpack.c.l.bf16 %v1522
        %v1539 = vunpack.c.l.bf16 %v1523
        %v1540 = vunpack.c.l.bf16 %v1524
        %v1541 = vunpack.c.l.bf16 %v1525
        %v1542 = vunpack.c.l.bf16 %v1526
        %v1543 = vld [vmem:[%s385 + $0x40] sm:$0x1]
        %v1544 = vunpack.c.l.bf16 %v1543
        %v1545 = vmul.f32 %v1493, %v1527
        %v1546 = vmul.f32 %v1494, %v1528
        %v1547 = vmul.f32 %v1495, %v1529
        %v1548 = vmul.f32 %v1496, %v1530
        %v1549 = vmul.f32 %v1497, %v1531
        %v1550 = vmul.f32 %v1498, %v1532
        %v1551 = vmul.f32 %v1499, %v1533
        %v1552 = vmul.f32 %v1500, %v1534
        %v1553 = vmul.f32 %v1501, %v1535
        %v1554 = vmul.f32 %v1502, %v1536
        %v1555 = vmul.f32 %v1503, %v1537
        %v1556 = vmul.f32 %v1504, %v1538
        %v1557 = vmul.f32 %v1505, %v1539
        %v1558 = vmul.f32 %v1506, %v1540
        %v1559 = vmul.f32 %v1507, %v1541
        %v1560 = vmul.f32 %v1508, %v1542
        %v1561 = vadd.f32 %v1477, %v1545
        %v1562 = vadd.f32 %v1478, %v1546
        %v1563 = vadd.f32 %v1479, %v1547
        %v1564 = vadd.f32 %v1480, %v1548
        %v1565 = vadd.f32 %v1481, %v1549
        %v1566 = vadd.f32 %v1482, %v1550
        %v1567 = vadd.f32 %v1483, %v1551
        %v1568 = vadd.f32 %v1484, %v1552
        %v1569 = vadd.f32 %v1485, %v1553
        %v1570 = vadd.f32 %v1486, %v1554
        %v1571 = vadd.f32 %v1487, %v1555
        %v1572 = vadd.f32 %v1488, %v1556
        %v1573 = vadd.f32 %v1489, %v1557
        %v1574 = vadd.f32 %v1490, %v1558
        %v1575 = vadd.f32 %v1491, %v1559
        %v1576 = vadd.f32 %v1492, %v1560
        %v1577 = vmul.f32 %v1510, %v1544
        %v1578 = vadd.f32 %v1509, %v1577
        %v1579 = vpack.c.bf16 %v1476, %v1476
        %v1580 = vpack.c.bf16 %v1562, %v1561
        %v1581 = vpack.c.bf16 %v1564, %v1563
        %v1582 = vpack.c.bf16 %v1566, %v1565
        %v1583 = vpack.c.bf16 %v1568, %v1567
        %v1584 = vpack.c.bf16 %v1570, %v1569
        %v1585 = vpack.c.bf16 %v1572, %v1571
        %v1586 = vpack.c.bf16 %v1574, %v1573
        %v1587 = vpack.c.bf16 %v1576, %v1575
        %v1588 = vperm.slane %v1578, 0
        %1589 = vmatpush.bf16.msra.mxu0 %v1587
        %1590 = vmatpush.bf16.msra.mxu0 %v1586
        %1591 = vmatpush.bf16.msra.mxu0 %v1585
        %1592 = vmatpush.bf16.msra.mxu0 %v1584
        %1593 = vmatpush.bf16.msra.mxu0 %v1583
        %1594 = vmatpush.bf16.msra.mxu0 %v1582
        %1595 = vmatpush.bf16.msra.mxu0 %v1581
        %1596 = vmatpush.bf16.msra.mxu0 %v1580
        %1597 = vmatmul.bf16.gmra.mxu0 %v1579
        %v1598 = vpop.f32.mrf.mxu0
        %v1599 = vadd.f32 %v1588, %v1598
        %v1600 = vpop.f32.mrf.mxu0
        %1601 = vdwg.mxu0
        %v1602 = vmax.f32 %v1599, 0.0
        %v1603 = vld [vmem:[%s7] sm:$0xff]
        %v1604 = vld [vmem:[%s7 + $0x10] sm:$0xff]
        %v1605 = vld [vmem:[%s7 + $0x20] sm:$0xff]
        %v1606 = vld [vmem:[%s7 + $0x30] sm:$0xff]
        %v1607 = vld [vmem:[%s7 + $0x40] sm:$0xff]
        %v1608 = vld [vmem:[%s7 + $0x50] sm:$0xff]
        %v1609 = vld [vmem:[%s7 + $0x60] sm:$0xff]
        %v1610 = vld [vmem:[%s7 + $0x70] sm:$0xff]
        %v1611 = vld [vmem:[%s7 + $0x80] sm:$0xff]
        %v1612 = vld [vmem:[%s7 + $0x90] sm:$0xff]
        %v1613 = vld [vmem:[%s7 + $0xa0] sm:$0xff]
        %v1614 = vld [vmem:[%s7 + $0xb0] sm:$0xff]
        %v1615 = vld [vmem:[%s7 + $0xc0] sm:$0xff]
        %v1616 = vld [vmem:[%s7 + $0xd0] sm:$0xff]
        %v1617 = vld [vmem:[%s7 + $0xe0] sm:$0xff]
        %v1618 = vld [vmem:[%s7 + $0xf0] sm:$0xff]
        %v1619 = vld [vmem:[%s7 + $0x8] sm:$0xff]
        %v1620 = vld [vmem:[%s7 + $0x18] sm:$0xff]
        %v1621 = vld [vmem:[%s7 + $0x28] sm:$0xff]
        %v1622 = vld [vmem:[%s7 + $0x38] sm:$0xff]
        %v1623 = vld [vmem:[%s7 + $0x48] sm:$0xff]
        %v1624 = vld [vmem:[%s7 + $0x58] sm:$0xff]
        %v1625 = vld [vmem:[%s7 + $0x68] sm:$0xff]
        %v1626 = vld [vmem:[%s7 + $0x78] sm:$0xff]
        %v1627 = vld [vmem:[%s7 + $0x88] sm:$0xff]
        %v1628 = vld [vmem:[%s7 + $0x98] sm:$0xff]
        %v1629 = vld [vmem:[%s7 + $0xa8] sm:$0xff]
        %v1630 = vld [vmem:[%s7 + $0xb8] sm:$0xff]
        %v1631 = vld [vmem:[%s7 + $0xc8] sm:$0xff]
        %v1632 = vld [vmem:[%s7 + $0xd8] sm:$0xff]
        %v1633 = vld [vmem:[%s7 + $0xe8] sm:$0xff]
        %v1634 = vld [vmem:[%s7 + $0xf8] sm:$0xff]
        %v1635 = vld [vmem:[%s7 + $0x100] ss:$0 sm:$0xff]
        %v1636 = vld [vmem:[%s7 + $0x108] ss:$0 sm:$0xff]
        %v1637 = vld [vmem:[%s390] sm:$0xf]
        %v1638 = vld [vmem:[%s390 + $0x4] sm:$0xf]
        %v1639 = vld [vmem:[%s390 + $0x8] sm:$0xf]
        %v1640 = vld [vmem:[%s390 + $0xc] sm:$0xf]
        %v1641 = vld [vmem:[%s390 + $0x10] sm:$0xf]
        %v1642 = vld [vmem:[%s390 + $0x14] sm:$0xf]
        %v1643 = vld [vmem:[%s390 + $0x18] sm:$0xf]
        %v1644 = vld [vmem:[%s390 + $0x1c] sm:$0xf]
        %v1645 = vld [vmem:[%s390 + $0x20] sm:$0xf]
        %v1646 = vld [vmem:[%s390 + $0x24] sm:$0xf]
        %v1647 = vld [vmem:[%s390 + $0x28] sm:$0xf]
        %v1648 = vld [vmem:[%s390 + $0x2c] sm:$0xf]
        %v1649 = vld [vmem:[%s390 + $0x30] sm:$0xf]
        %v1650 = vld [vmem:[%s390 + $0x34] sm:$0xf]
        %v1651 = vld [vmem:[%s390 + $0x38] sm:$0xf]
        %v1652 = vld [vmem:[%s390 + $0x3c] sm:$0xf]
        %v1653 = vunpack.c.l.bf16 %v1637
        %v1654 = vunpack.c.l.bf16 %v1638
        %v1655 = vunpack.c.l.bf16 %v1639
        %v1656 = vunpack.c.l.bf16 %v1640
        %v1657 = vunpack.c.l.bf16 %v1641
        %v1658 = vunpack.c.l.bf16 %v1642
        %v1659 = vunpack.c.l.bf16 %v1643
        %v1660 = vunpack.c.l.bf16 %v1644
        %v1661 = vunpack.c.l.bf16 %v1645
        %v1662 = vunpack.c.l.bf16 %v1646
        %v1663 = vunpack.c.l.bf16 %v1647
        %v1664 = vunpack.c.l.bf16 %v1648
        %v1665 = vunpack.c.l.bf16 %v1649
        %v1666 = vunpack.c.l.bf16 %v1650
        %v1667 = vunpack.c.l.bf16 %v1651
        %v1668 = vunpack.c.l.bf16 %v1652
        %v1669 = vld [vmem:[%s390 + $0x40] sm:$0x1]
        %v1670 = vunpack.c.l.bf16 %v1669
        %v1671 = vmul.f32 %v1619, %v1653
        %v1672 = vmul.f32 %v1620, %v1654
        %v1673 = vmul.f32 %v1621, %v1655
        %v1674 = vmul.f32 %v1622, %v1656
        %v1675 = vmul.f32 %v1623, %v1657
        %v1676 = vmul.f32 %v1624, %v1658
        %v1677 = vmul.f32 %v1625, %v1659
        %v1678 = vmul.f32 %v1626, %v1660
        %v1679 = vmul.f32 %v1627, %v1661
        %v1680 = vmul.f32 %v1628, %v1662
        %v1681 = vmul.f32 %v1629, %v1663
        %v1682 = vmul.f32 %v1630, %v1664
        %v1683 = vmul.f32 %v1631, %v1665
        %v1684 = vmul.f32 %v1632, %v1666
        %v1685 = vmul.f32 %v1633, %v1667
        %v1686 = vmul.f32 %v1634, %v1668
        %v1687 = vadd.f32 %v1603, %v1671
        %v1688 = vadd.f32 %v1604, %v1672
        %v1689 = vadd.f32 %v1605, %v1673
        %v1690 = vadd.f32 %v1606, %v1674
        %v1691 = vadd.f32 %v1607, %v1675
        %v1692 = vadd.f32 %v1608, %v1676
        %v1693 = vadd.f32 %v1609, %v1677
        %v1694 = vadd.f32 %v1610, %v1678
        %v1695 = vadd.f32 %v1611, %v1679
        %v1696 = vadd.f32 %v1612, %v1680
        %v1697 = vadd.f32 %v1613, %v1681
        %v1698 = vadd.f32 %v1614, %v1682
        %v1699 = vadd.f32 %v1615, %v1683
        %v1700 = vadd.f32 %v1616, %v1684
        %v1701 = vadd.f32 %v1617, %v1685
        %v1702 = vadd.f32 %v1618, %v1686
        %v1703 = vmul.f32 %v1636, %v1670
        %v1704 = vadd.f32 %v1635, %v1703
        %v1705 = vpack.c.bf16 %v1602, %v1602
        %v1706 = vpack.c.bf16 %v1688, %v1687
        %v1707 = vpack.c.bf16 %v1690, %v1689
        %v1708 = vpack.c.bf16 %v1692, %v1691
        %v1709 = vpack.c.bf16 %v1694, %v1693
        %v1710 = vpack.c.bf16 %v1696, %v1695
        %v1711 = vpack.c.bf16 %v1698, %v1697
        %v1712 = vpack.c.bf16 %v1700, %v1699
        %v1713 = vpack.c.bf16 %v1702, %v1701
        %v1714 = vperm.slane %v1704, 0
        %1715 = vmatpush.bf16.msra.mxu0 %v1713
        %1716 = vmatpush.bf16.msra.mxu0 %v1712
        %1717 = vmatpush.bf16.msra.mxu0 %v1711
        %1718 = vmatpush.bf16.msra.mxu0 %v1710
        %1719 = vmatpush.bf16.msra.mxu0 %v1709
        %1720 = vmatpush.bf16.msra.mxu0 %v1708
        %1721 = vmatpush.bf16.msra.mxu0 %v1707
        %1722 = vmatpush.bf16.msra.mxu0 %v1706
        %1723 = vmatmul.bf16.gmra.mxu0 %v1705
        %v1724 = vpop.f32.mrf.mxu0
        %v1725 = vadd.f32 %v1714, %v1724
        %v1726 = vpop.f32.mrf.mxu0
        %1727 = vdwg.mxu0
        %1728 = vst [vmem:[%s370] sm:$0xff] %v1725
        %s1729 = sand.u32 %s240, 1
        %s1730 = scalar_lea.sflag [#allocation3], %s1729
        %s1731 = sand.u32 %s240, 1
        %s1732 = smul.addr %s1731, 8
        %s1733 = scalar_lea.vmem [#allocation2], %s1732
        // Predicated region
        $region57: #{tpu_custom_call.1} parent=55 // pred_check
          %p1734 = pneg %p250
        $region58: #{tpu_custom_call.1} parent=55 // pred_check_branch
          %1736 = sbr.rel (%p1734) target = $region60
        $region59: #{tpu_custom_call.1} parent=55 // pred_region
          %1738 = vsyncadd %s1730, 0
          %s1739 = smul.addr %s23, 8
          %s1740 = scalar_lea.hbm %s9, %s1739
          %s1742 = sshll.u32 %s1733, 4
          %s1743 = int_to_ptr.vmem [resolvable:$true] %s1742
          %s1744 = sshll.u32 %s1740, 4
          %s1745 = int_to_ptr.hbm [resolvable:$true] %s1744
          %1747 = dma.vmem_to_hbm [thread:$0]  %s1743, 128, %s1745, %s1730
        $region60: #{tpu_custom_call.1} parent=55 // pred_fallthru
          _
      $region56: #{tpu_custom_call.1} parent=5 // pred_fallthru
        _
      %p1748 = scmp.le.s32.totalorder 2, %s18
      // Predicated region
      $region61: #{tpu_custom_call.1} parent=5 // pred_check
        %p1749 = pneg %p1748
      $region62: #{tpu_custom_call.1} parent=5 // pred_check_branch
        %1751 = sbr.rel (%p1749) target = $region64
      $region63: #{tpu_custom_call.1} parent=5 // pred_region
        %s1752 = ssub.s32 %s18, 2
        // Predicated region
        $region65: #{tpu_custom_call.1} parent=63 // pred_check
          %p1753 = pneg %p256
        $region66: #{tpu_custom_call.1} parent=63 // pred_check_branch
          %1755 = sbr.rel (%p1753) target = $region68
        $region67: #{tpu_custom_call.1} parent=63 // pred_region
          %s1756 = sand.u32 %s241, 1
          %s1757 = scalar_lea.sflag [#allocation3], %s1756
          %s1758 = sand.u32 %s241, 1
          %s1759 = smul.addr %s1758, 8
          %s1760 = scalar_lea.vmem [#allocation2], %s1759
          %1762 = dma.done %s1757, 128
        $region68: #{tpu_custom_call.1} parent=63 // pred_fallthru
          _
      $region64: #{tpu_custom_call.1} parent=5 // pred_fallthru
        _
    $region6: #{tpu_custom_call.1} parent=1 // loop_footer
      %s22 = sadd.s32 1, %s18
    $region7: #{tpu_custom_call.1} parent=1 // loop_footer_branch
      %17 = sbr.rel target = $region3
    $region8: #{tpu_custom_call.1} parent=1 // loop_exit
      _
    %1763 = vsyncpa [#allocation3], 1
    %s1764 = scalar_lea.sflag [#allocation3], 1
    %1765 = vsyncpa %s1764, 1

</llo_original>
